<compile_context>
chip_gen: v7x
topology: tpu7x:2x2x1
jax: 0.10.0
libtpu: 0.0.40
codegen_flags: <defaults>
</compile_context>

<pallas_src>
import jax
import jax.numpy as jnp
from jax.experimental import pallas as pl
from jax.experimental.pallas import tpu as pltpu

hidden_dims = [512, 256]
max_sequence_length = 8           # stand-in for config['SmallModel']['max_sequence_length']
input_dim = 100 * max_sequence_length   # 800
num_classes = 3

H1 = hidden_dims[0]               # 512
H2 = hidden_dims[1]               # 256
N_OUT_PAD = 128                   # lane-dense padded output width (real classes = 3)


def _round_up(x, m):
    return (x + m - 1) // m * m


def dbn_kernel(x_ref, w1_ref, b1_ref, w2_ref, b2_ref, w3_ref, b3_ref, out_ref):
    """Fused MLP: relu(x@W1+b1) -> relu(@W2+b2) -> @W3+b3, all in VMEM.

    x arrives as raw f32 and is cast to bf16 on the VPU right before the first
    matmul (hidden under the MXU).  Weights are bf16; accumulation and the
    bias/ReLU epilogues stay f32.  Output is stored as bf16 (lane-dense 128).
    """
    x = x_ref[...].astype(jnp.bfloat16)
    h = jnp.dot(x, w1_ref[...], preferred_element_type=jnp.float32)
    h = jnp.maximum(h + b1_ref[...], 0.0)
    h = jnp.dot(h.astype(jnp.bfloat16), w2_ref[...], preferred_element_type=jnp.float32)
    h = jnp.maximum(h + b2_ref[...], 0.0)
    o = jnp.dot(h.astype(jnp.bfloat16), w3_ref[...], preferred_element_type=jnp.float32)
    out_ref[...] = (o + b3_ref[...]).astype(out_ref.dtype)


def prepare_params(params):
    """Convert PyTorch-layout-equivalent f32 params to kernel layout.

    - W3 / b3 columns zero-padded 3 -> N_OUT_PAD (padded lanes are exactly zero,
      so the wrapper's [:, :3] slice is exact).
    - Weights cast to bf16 (halves HBM traffic); biases stay f32 for the f32
      epilogue.  W1 keeps its true K = 800 rows (no K padding).
    """
    (w1, b1), (w2, b2), (w3, b3) = params
    w3p = jnp.zeros((H2, N_OUT_PAD), jnp.float32).at[:, :w3.shape[1]].set(w3)
    b3p = jnp.zeros((1, N_OUT_PAD), jnp.float32).at[:, :b3.shape[1]].set(b3)
    return (w1.astype(jnp.bfloat16), b1.astype(jnp.float32),
            w2.astype(jnp.bfloat16), b2.astype(jnp.float32),
            w3p.astype(jnp.bfloat16), b3p)


def _choose_tile_m(b):
    if b <= 256:
        return b                      # single full-array tile (latency path)
    # >= 2 grid steps (v7x megacore gets both TensorCores busy); big tiles to
    # amortize the ~0.35us per-step overhead; cap at 1024 rows so the f32 x
    # tile + f32 intermediates (~13 MiB) fit scoped VMEM on v5e/v7x.
    half = -(-b // 2)                 # cdiv(b, 2)
    return min(1024, _round_up(half, 256))


@jax.jit
def dbn_forward(x, prepared):
    """x: any shape with leading batch dim; flattened to (B, input_dim)."""
    w1, b1, w2, b2, w3, b3 = prepared
    b = x.shape[0]
    x2d = x.reshape(b, -1)            # reshape only; no pad, no cast (f32 in HBM)
    k = x2d.shape[1]                  # 800

    tile_m = _choose_tile_m(b)
    grid = (pl.cdiv(b, tile_m),)      # ragged last block handled by Pallas;
                                      # rows are independent, padded rows dropped.

    flops = 2 * b * (k * H1 + H1 * H2 + H2 * N_OUT_PAD)
    bytes_accessed = (x2d.size * 4
                      + w1.size * 2 + w2.size * 2 + w3.size * 2
                      + b1.size * 4 + b2.size * 4 + b3.size * 4
                      + b * N_OUT_PAD * 2)
    cost = pl.CostEstimate(flops=flops, transcendentals=0,
                           bytes_accessed=bytes_accessed)

    const = lambda i: (0, 0)   # weights/biases stay VMEM-resident across the grid
    out = pl.pallas_call(
        dbn_kernel,
        out_shape=jax.ShapeDtypeStruct((b, N_OUT_PAD), jnp.bfloat16),
        grid=grid,
        in_specs=[
            pl.BlockSpec((tile_m, k), lambda i: (i, 0)),
            pl.BlockSpec((k, H1), const),
            pl.BlockSpec((1, H1), const),
            pl.BlockSpec((H1, H2), const),
            pl.BlockSpec((1, H2), const),
            pl.BlockSpec((H2, N_OUT_PAD), const),
            pl.BlockSpec((1, N_OUT_PAD), const),
        ],
        out_specs=pl.BlockSpec((tile_m, N_OUT_PAD), lambda i: (i, 0)),
        compiler_params=pltpu.CompilerParams(
            dimension_semantics=("parallel",),
            vmem_limit_bytes=32 * 1024 * 1024),
        cost_estimate=cost,
    )(x2d, w1, b1, w2, b2, w3, b3)

    # Drop padded (exactly-zero) output lanes; promote back to f32.
    return out[:, :num_classes].astype(jnp.float32)


def init_params(key):
    """Deterministic init mirroring nn.Linear's U(-1/sqrt(fan_in), 1/sqrt(fan_in)).

    Weights are stored as (in_features, out_features) -- i.e. transposed
    relative to PyTorch -- so the kernel does x @ W directly.
    """
    dims = [input_dim] + hidden_dims + [num_classes]
    params = []
    for i in range(len(dims) - 1):
        fan_in, fan_out = dims[i], dims[i + 1]
        key, kw, kb = jax.random.split(key, 3)
        bound = 1.0 / jnp.sqrt(jnp.float32(fan_in))
        w = jax.random.uniform(kw, (fan_in, fan_out), jnp.float32, -bound, bound)
        bias = jax.random.uniform(kb, (1, fan_out), jnp.float32, -bound, bound)
        params.append((w, bias))
    return params


def dbn_reference(x, params):
    """Pure-JAX f32 reference for correctness checking."""
    h = x.reshape(x.shape[0], -1).astype(jnp.float32)
    (w1, b1), (w2, b2), (w3, b3) = params
    h = jnp.maximum(h @ w1 + b1, 0.0)
    h = jnp.maximum(h @ w2 + b2, 0.0)
    return h @ w3 + b3


if __name__ == "__main__":
    key = jax.random.PRNGKey(0)
    key, kx = jax.random.split(key)

    # Input shaped like (batch, 100 features, max_sequence_length) -> flattened
    # to (batch, 100 * max_sequence_length) inside forward, as in the PyTorch code.
    batch = 2
    x = jax.random.normal(kx, (batch, 100, max_sequence_length), dtype=jnp.float32)

    params = init_params(key)
    prepared = prepare_params(params)

    out = dbn_forward(x, prepared)
    out = jax.block_until_ready(out)

    ref = dbn_reference(x, params)
    assert out.shape == (batch, num_classes), out.shape
    # bf16 weights / bf16 inter-layer casts / bf16 output store on the MXU path
    # => loosen tolerance vs the f32 reference.
    assert jnp.allclose(out, ref, atol=5e-2, rtol=5e-2), "mismatch vs reference"

    print("KERNEL_OK")
</pallas_src>

<mosaic_0001>
module attributes {stable_mosaic.version = 11 : i64} {
  func.func @dbn_kernel(%arg0: i32, %arg1: memref<2x800xf32, #tpu.memory_space<vmem>>, %arg2: memref<800x512xbf16, #tpu.memory_space<vmem>>, %arg3: memref<1x512xf32, #tpu.memory_space<vmem>>, %arg4: memref<512x256xbf16, #tpu.memory_space<vmem>>, %arg5: memref<1x256xf32, #tpu.memory_space<vmem>>, %arg6: memref<256x128xbf16, #tpu.memory_space<vmem>>, %arg7: memref<1x128xf32, #tpu.memory_space<vmem>>, %arg8: memref<2x128xbf16, #tpu.memory_space<vmem>>) attributes {dimension_semantics = [#tpu.dimension_semantics<parallel>], iteration_bounds = array<i64: 1>, scalar_prefetch = 0 : i64, scratch_operands = 0 : i64, tpu.core_type = #tpu.core_type<tc>, window_params = [{transform_indices = @transform_0, window_bounds = array<i64: 2, 800>}, {pipeline_mode = #tpu.pipeline_mode<synchronous>, transform_indices = @transform_1, window_bounds = array<i64: 800, 512>}, {pipeline_mode = #tpu.pipeline_mode<synchronous>, transform_indices = @transform_2, window_bounds = array<i64: 1, 512>}, {pipeline_mode = #tpu.pipeline_mode<synchronous>, transform_indices = @transform_3, window_bounds = array<i64: 512, 256>}, {pipeline_mode = #tpu.pipeline_mode<synchronous>, transform_indices = @transform_4, window_bounds = array<i64: 1, 256>}, {pipeline_mode = #tpu.pipeline_mode<synchronous>, transform_indices = @transform_5, window_bounds = array<i64: 256, 128>}, {pipeline_mode = #tpu.pipeline_mode<synchronous>, transform_indices = @transform_6, window_bounds = array<i64: 1, 128>}, {transform_indices = @transform_7, window_bounds = array<i64: 2, 128>}]} {
    %c0 = arith.constant 0 : index
    %c0_0 = arith.constant 0 : index
    %0 = vector.load %arg1[%c0, %c0_0] : memref<2x800xf32, #tpu.memory_space<vmem>>, vector<2x800xf32>
    %1 = arith.truncf %0 : vector<2x800xf32> to vector<2x800xbf16>
    %c0_1 = arith.constant 0 : index
    %c0_2 = arith.constant 0 : index
    %2 = vector.load %arg2[%c0_1, %c0_2] : memref<800x512xbf16, #tpu.memory_space<vmem>>, vector<800x512xbf16>
    %cst = arith.constant dense<0.000000e+00> : vector<2x512xf32>
    %3 = tpu.matmul %1, %2, %cst {dimension_numbers = #tpu.dot_dimension_numbers<[1], [0], [0], [1], [0, 0, 1, 1], [], []>} : vector<2x800xbf16>, vector<800x512xbf16>, vector<2x512xf32> -> vector<2x512xf32>
    %c0_3 = arith.constant 0 : index
    %c0_4 = arith.constant 0 : index
    %4 = vector.load %arg3[%c0_3, %c0_4] : memref<1x512xf32, #tpu.memory_space<vmem>>, vector<1x512xf32>
    %5 = vector.broadcast %4 : vector<1x512xf32> to vector<2x512xf32>
    %6 = arith.addf %3, %5 : vector<2x512xf32>
    %cst_5 = arith.constant 0.000000e+00 : f32
    %7 = vector.broadcast %cst_5 : f32 to vector<2x512xf32>
    %8 = arith.maximumf %6, %7 : vector<2x512xf32>
    %9 = arith.truncf %8 : vector<2x512xf32> to vector<2x512xbf16>
    %c0_6 = arith.constant 0 : index
    %c0_7 = arith.constant 0 : index
    %10 = vector.load %arg4[%c0_6, %c0_7] : memref<512x256xbf16, #tpu.memory_space<vmem>>, vector<512x256xbf16>
    %cst_8 = arith.constant dense<0.000000e+00> : vector<2x256xf32>
    %11 = tpu.matmul %9, %10, %cst_8 {dimension_numbers = #tpu.dot_dimension_numbers<[1], [0], [0], [1], [0, 0, 1, 1], [], []>} : vector<2x512xbf16>, vector<512x256xbf16>, vector<2x256xf32> -> vector<2x256xf32>
    %c0_9 = arith.constant 0 : index
    %c0_10 = arith.constant 0 : index
    %12 = vector.load %arg5[%c0_9, %c0_10] : memref<1x256xf32, #tpu.memory_space<vmem>>, vector<1x256xf32>
    %13 = vector.broadcast %12 : vector<1x256xf32> to vector<2x256xf32>
    %14 = arith.addf %11, %13 : vector<2x256xf32>
    %cst_11 = arith.constant 0.000000e+00 : f32
    %15 = vector.broadcast %cst_11 : f32 to vector<2x256xf32>
    %16 = arith.maximumf %14, %15 : vector<2x256xf32>
    %17 = arith.truncf %16 : vector<2x256xf32> to vector<2x256xbf16>
    %c0_12 = arith.constant 0 : index
    %c0_13 = arith.constant 0 : index
    %18 = vector.load %arg6[%c0_12, %c0_13] : memref<256x128xbf16, #tpu.memory_space<vmem>>, vector<256x128xbf16>
    %cst_14 = arith.constant dense<0.000000e+00> : vector<2x128xf32>
    %19 = tpu.matmul %17, %18, %cst_14 {dimension_numbers = #tpu.dot_dimension_numbers<[1], [0], [0], [1], [0, 0, 1, 1], [], []>} : vector<2x256xbf16>, vector<256x128xbf16>, vector<2x128xf32> -> vector<2x128xf32>
    %c0_15 = arith.constant 0 : index
    %c0_16 = arith.constant 0 : index
    %20 = vector.load %arg7[%c0_15, %c0_16] : memref<1x128xf32, #tpu.memory_space<vmem>>, vector<1x128xf32>
    %21 = vector.broadcast %20 : vector<1x128xf32> to vector<2x128xf32>
    %22 = arith.addf %19, %21 : vector<2x128xf32>
    %23 = arith.truncf %22 : vector<2x128xf32> to vector<2x128xbf16>
    %c0_17 = arith.constant 0 : index
    %c0_18 = arith.constant 0 : index
    %24 = vector.load %arg8[%c0_17, %c0_18] : memref<2x128xbf16, #tpu.memory_space<vmem>>, vector<2x128xbf16>
    tpu.vector_store %arg8[%c0_17, %c0_18], %23 {strides = array<i32>} : memref<2x128xbf16, #tpu.memory_space<vmem>>, vector<2x128xbf16>,
    return
  }
  func.func @transform_0(%arg0: i32) -> (i32, i32) {
    %c0_i32 = arith.constant 0 : i32
    %c0_i32_0 = arith.constant 0 : i32
    return %arg0, %c0_i32 : i32, i32
  }
  func.func @transform_1(%arg0: i32) -> (i32, i32) {
    %c0_i32 = arith.constant 0 : i32
    %c0_i32_0 = arith.constant 0 : i32
    %c0_i32_1 = arith.constant 0 : i32
    return %c0_i32, %c0_i32_0 : i32, i32
  }
  func.func @transform_2(%arg0: i32) -> (i32, i32) {
    %c0_i32 = arith.constant 0 : i32
    %c0_i32_0 = arith.constant 0 : i32
    %c0_i32_1 = arith.constant 0 : i32
    return %c0_i32, %c0_i32_0 : i32, i32
  }
  func.func @transform_3(%arg0: i32) -> (i32, i32) {
    %c0_i32 = arith.constant 0 : i32
    %c0_i32_0 = arith.constant 0 : i32
    %c0_i32_1 = arith.constant 0 : i32
    return %c0_i32, %c0_i32_0 : i32, i32
  }
  func.func @transform_4(%arg0: i32) -> (i32, i32) {
    %c0_i32 = arith.constant 0 : i32
    %c0_i32_0 = arith.constant 0 : i32
    %c0_i32_1 = arith.constant 0 : i32
    return %c0_i32, %c0_i32_0 : i32, i32
  }
  func.func @transform_5(%arg0: i32) -> (i32, i32) {
    %c0_i32 = arith.constant 0 : i32
    %c0_i32_0 = arith.constant 0 : i32
    %c0_i32_1 = arith.constant 0 : i32
    return %c0_i32, %c0_i32_0 : i32, i32
  }
  func.func @transform_6(%arg0: i32) -> (i32, i32) {
    %c0_i32 = arith.constant 0 : i32
    %c0_i32_0 = arith.constant 0 : i32
    %c0_i32_1 = arith.constant 0 : i32
    return %c0_i32, %c0_i32_0 : i32, i32
  }
  func.func @transform_7(%arg0: i32) -> (i32, i32) {
    %c0_i32 = arith.constant 0 : i32
    %c0_i32_0 = arith.constant 0 : i32
    return %arg0, %c0_i32 : i32, i32
  }
}

</mosaic_0001>

<llo_original>
// kernel: dbn_forward.1
$region0: #{dbn_forward.1}
  #allocation0 [shape = 'u32[]', space=smem, size = 0x4, offset = 0x4, fixed_abs, tag = 'smem constant byte address 0x4 - core index']
  #allocation1 [shape = 'u32[144,128]{1,0:T(1,128)}', space=vmem, size = 0x12000, scoped, tag = 'internal scratch']
  %s0 = inlined_call_operand.vmem [shape: f32[2,800], index: 0, kind: input, shape index: {}]
  %s1 = inlined_call_operand.hbm [shape: bf16[800,512], index: 1, kind: input, shape index: {}]
  %s2 = inlined_call_operand.vmem [shape: f32[1,512], index: 2, kind: input, shape index: {}]
  %s3 = inlined_call_operand.hbm [shape: bf16[512,256], index: 3, kind: input, shape index: {}]
  %s4 = inlined_call_operand.vmem [shape: f32[1,256], index: 4, kind: input, shape index: {}]
  %s5 = inlined_call_operand.vmem [shape: bf16[256,128], index: 5, kind: input, shape index: {}]
  %s6 = inlined_call_operand.vmem [shape: f32[1,128], index: 6, kind: input, shape index: {}]
  %s7 = inlined_call_operand.vmem [shape: bf16[2,128], index: 7, kind: output, shape index: {}]
  %s8 = sld [smem:[#allocation0]]
  $region46: #{dbn_forward.1} parent=0
    _
  %s10 = ssub.s32 1, %s8
  %s11 = scalar_select 0, %s10, %s8
  $region1: #{dbn_forward.1} parent=0
    #allocation2 [shape = 'u8[819200]{0}', space=vmem, size = 0xc8000, scoped, tag = 'input window, operand 1, single buffered']
    #allocation3 [shape = 's32[1]{0}', space=sflag, size = 0x4, scoped, tag = 'scoped memory for dbn_forward.1']
    #allocation4 [shape = 'u8[262144]{0}', space=vmem, size = 0x40000, scoped, tag = 'input window, operand 3, single buffered']
    #allocation5 [shape = 's32[1]{0}', space=sflag, size = 0x4, scoped, tag = 'scoped memory for dbn_forward.1']
    %12 = vsyncpa [#allocation3], 0
    %13 = vsyncpa [#allocation5], 0
    // Predicated region
    $region2: #{dbn_forward.1} parent=1 // pred_check
      _
    $region3: #{dbn_forward.1} parent=1 // pred_check_branch
      %15 = sbr.rel (0) target = $region5
    $region4: #{dbn_forward.1} parent=1 // pred_region
      _
    $region5: #{dbn_forward.1} parent=1 // pred_fallthru
      _
    // Predicated region
    $region6: #{dbn_forward.1} parent=1 // pred_check
      _
    $region7: #{dbn_forward.1} parent=1 // pred_check_branch
      %17 = sbr.rel (0) target = $region9
    $region8: #{dbn_forward.1} parent=1 // pred_region
      %s19 = ssub.s32 25600, 25600
      %20 = vsyncadd [#allocation3], %s19
      %s21 = sshll.u32 [#allocation2], 4
      %s22 = int_to_ptr.vmem [resolvable:$true] %s21
      %27 = dma.hbm_to_vmem [thread:$0]  %s1, 25600, %s22, [#allocation3], 256, 256, 16
    $region9: #{dbn_forward.1} parent=1 // pred_fallthru
      _
    // Predicated region
    $region10: #{dbn_forward.1} parent=1 // pred_check
      _
    $region11: #{dbn_forward.1} parent=1 // pred_check_branch
      %29 = sbr.rel (0) target = $region13
    $region12: #{dbn_forward.1} parent=1 // pred_region
      _
    $region13: #{dbn_forward.1} parent=1 // pred_fallthru
      _
    // Predicated region
    $region14: #{dbn_forward.1} parent=1 // pred_check
      _
    $region15: #{dbn_forward.1} parent=1 // pred_check_branch
      %31 = sbr.rel (0) target = $region17
    $region16: #{dbn_forward.1} parent=1 // pred_region
      %s33 = ssub.s32 8192, 8192
      %34 = vsyncadd [#allocation5], %s33
      %s35 = sshll.u32 [#allocation4], 4
      %s36 = int_to_ptr.vmem [resolvable:$true] %s35
      %41 = dma.hbm_to_vmem [thread:$0]  %s3, 8192, %s36, [#allocation5], 128, 128, 8
    $region17: #{dbn_forward.1} parent=1 // pred_fallthru
      _
    // Predicated region
    $region18: #{dbn_forward.1} parent=1 // pred_check
      _
    $region19: #{dbn_forward.1} parent=1 // pred_check_branch
      %43 = sbr.rel (0) target = $region21
    $region20: #{dbn_forward.1} parent=1 // pred_region
      _
    $region21: #{dbn_forward.1} parent=1 // pred_fallthru
      _
    // Predicated region
    $region22: #{dbn_forward.1} parent=1 // pred_check
      _
    $region23: #{dbn_forward.1} parent=1 // pred_check_branch
      %45 = sbr.rel (0) target = $region25
    $region24: #{dbn_forward.1} parent=1 // pred_region
      _
    $region25: #{dbn_forward.1} parent=1 // pred_fallthru
      _
    // Predicated region
    $region26: #{dbn_forward.1} parent=1 // pred_check
      _
    $region27: #{dbn_forward.1} parent=1 // pred_check_branch
      %47 = sbr.rel (0) target = $region29
    $region28: #{dbn_forward.1} parent=1 // pred_region
      _
    $region29: #{dbn_forward.1} parent=1 // pred_fallthru
      _
    // Predicated region
    $region30: #{dbn_forward.1} parent=1 // pred_check
      _
    $region31: #{dbn_forward.1} parent=1 // pred_check_branch
      %49 = sbr.rel (0) target = $region33
    $region32: #{dbn_forward.1} parent=1 // pred_region
      %50 = dma.done [#allocation3], 25600
    $region33: #{dbn_forward.1} parent=1 // pred_fallthru
      _
    // Predicated region
    $region34: #{dbn_forward.1} parent=1 // pred_check
      _
    $region35: #{dbn_forward.1} parent=1 // pred_check_branch
      %52 = sbr.rel (0) target = $region37
    $region36: #{dbn_forward.1} parent=1 // pred_region
      %53 = dma.done [#allocation5], 8192
    $region37: #{dbn_forward.1} parent=1 // pred_fallthru
      _
    %v55 = vld [vmem:[%s0] sm:$0xff]
    %v56 = vld [vmem:[%s0 + $0x8] sm:$0x3f]
    %v59 = vcombine.high %v55, %v55
    %v61 = vunpack.c.l.s4 1983009808
    %v62 = vunpack.c.0.s8 %v61
    %v63 = vlaneseq
    %v64 = vshrl.u32 %v63, 7
    %v65 = vsub.s32 %v62, %v64
    %v66 = vrot.slane %v55, %v65
    %v68 = vunpack.c.l.s4 1983009808
    %v69 = vunpack.c.0.s8 %v68
    %v70 = vlaneseq
    %v71 = vshrl.u32 %v70, 7
    %v72 = vsub.s32 %v69, %v71
    %v73 = vrot.slane %v59, %v72
    %v74 = vcombine.high %v66, %v66
    %v75 = vcombine.high %v73, %v73
    %v76 = vcombine.high %v56, %v56
    %v78 = vunpack.c.l.s4 1983009808
    %v79 = vunpack.c.0.s8 %v78
    %v80 = vlaneseq
    %v81 = vshrl.u32 %v80, 7
    %v82 = vsub.s32 %v79, %v81
    %v83 = vrot.slane %v56, %v82
    %v85 = vunpack.c.l.s4 1983009808
    %v86 = vunpack.c.0.s8 %v85
    %v87 = vlaneseq
    %v88 = vshrl.u32 %v87, 7
    %v89 = vsub.s32 %v86, %v88
    %v90 = vrot.slane %v76, %v89
    %v91 = vcombine.high %v83, %v83
    %v99 = vpack.c.bf16 %v66, %v66
    %v100 = vpack.c.bf16 %v74, %v74
    %v101 = vpack.c.bf16 %v73, %v73
    %v102 = vpack.c.bf16 %v75, %v75
    %v103 = vpack.c.bf16 %v83, %v83
    %v104 = vpack.c.bf16 %v91, %v91
    %v105 = vpack.c.bf16 %v90, %v90
    %v106 = vld [vmem:[#allocation2] sm:$0xff]
    %v107 = vld [vmem:[#allocation2 + $0x8] sm:$0xff]
    %v108 = vld [vmem:[#allocation2 + $0x10] sm:$0xff]
    %v109 = vld [vmem:[#allocation2 + $0x18] sm:$0xff]
    %v110 = vld [vmem:[#allocation2 + $0x20] sm:$0xff]
    %v111 = vld [vmem:[#allocation2 + $0x28] sm:$0xff]
    %v112 = vld [vmem:[#allocation2 + $0x30] sm:$0xff]
    %v113 = vld [vmem:[#allocation2 + $0x38] sm:$0xff]
    %v114 = vld [vmem:[#allocation2 + $0x40] sm:$0xff]
    %v115 = vld [vmem:[#allocation2 + $0x48] sm:$0xff]
    %v116 = vld [vmem:[#allocation2 + $0x50] sm:$0xff]
    %v117 = vld [vmem:[#allocation2 + $0x58] sm:$0xff]
    %v118 = vld [vmem:[#allocation2 + $0x60] sm:$0xff]
    %v119 = vld [vmem:[#allocation2 + $0x68] sm:$0xff]
    %v120 = vld [vmem:[#allocation2 + $0x70] sm:$0xff]
    %v121 = vld [vmem:[#allocation2 + $0x78] sm:$0xff]
    %v122 = vld [vmem:[#allocation2 + $0x80] sm:$0xff]
    %v123 = vld [vmem:[#allocation2 + $0x88] sm:$0xff]
    %v124 = vld [vmem:[#allocation2 + $0x90] sm:$0xff]
    %v125 = vld [vmem:[#allocation2 + $0x98] sm:$0xff]
    %v126 = vld [vmem:[#allocation2 + $0xa0] sm:$0xff]
    %v127 = vld [vmem:[#allocation2 + $0xa8] sm:$0xff]
    %v128 = vld [vmem:[#allocation2 + $0xb0] sm:$0xff]
    %v129 = vld [vmem:[#allocation2 + $0xb8] sm:$0xff]
    %v130 = vld [vmem:[#allocation2 + $0xc0] sm:$0xff]
    %v131 = vld [vmem:[#allocation2 + $0xc8] sm:$0xff]
    %v132 = vld [vmem:[#allocation2 + $0xd0] sm:$0xff]
    %v133 = vld [vmem:[#allocation2 + $0xd8] sm:$0xff]
    %v134 = vld [vmem:[#allocation2 + $0xe0] sm:$0xff]
    %v135 = vld [vmem:[#allocation2 + $0xe8] sm:$0xff]
    %v136 = vld [vmem:[#allocation2 + $0xf0] sm:$0xff]
    %v137 = vld [vmem:[#allocation2 + $0xf8] sm:$0xff]
    %v138 = vld [vmem:[#allocation2 + $0x100] sm:$0xff]
    %v139 = vld [vmem:[#allocation2 + $0x108] sm:$0xff]
    %v140 = vld [vmem:[#allocation2 + $0x110] sm:$0xff]
    %v141 = vld [vmem:[#allocation2 + $0x118] sm:$0xff]
    %v142 = vld [vmem:[#allocation2 + $0x120] sm:$0xff]
    %v143 = vld [vmem:[#allocation2 + $0x128] sm:$0xff]
    %v144 = vld [vmem:[#allocation2 + $0x130] sm:$0xff]
    %v145 = vld [vmem:[#allocation2 + $0x138] sm:$0xff]
    %v146 = vld [vmem:[#allocation2 + $0x140] sm:$0xff]
    %v147 = vld [vmem:[#allocation2 + $0x148] sm:$0xff]
    %v148 = vld [vmem:[#allocation2 + $0x150] sm:$0xff]
    %v149 = vld [vmem:[#allocation2 + $0x158] sm:$0xff]
    %v150 = vld [vmem:[#allocation2 + $0x160] sm:$0xff]
    %v151 = vld [vmem:[#allocation2 + $0x168] sm:$0xff]
    %v152 = vld [vmem:[#allocation2 + $0x170] sm:$0xff]
    %v153 = vld [vmem:[#allocation2 + $0x178] sm:$0xff]
    %v154 = vld [vmem:[#allocation2 + $0x180] sm:$0xff]
    %v155 = vld [vmem:[#allocation2 + $0x188] sm:$0xff]
    %v156 = vld [vmem:[#allocation2 + $0x190] sm:$0xff]
    %v157 = vld [vmem:[#allocation2 + $0x198] sm:$0xff]
    %v158 = vld [vmem:[#allocation2 + $0x1a0] sm:$0xff]
    %v159 = vld [vmem:[#allocation2 + $0x1a8] sm:$0xff]
    %v160 = vld [vmem:[#allocation2 + $0x1b0] sm:$0xff]
    %v161 = vld [vmem:[#allocation2 + $0x1b8] sm:$0xff]
    %v162 = vld [vmem:[#allocation2 + $0x1c0] sm:$0xff]
    %v163 = vld [vmem:[#allocation2 + $0x1c8] sm:$0xff]
    %v164 = vld [vmem:[#allocation2 + $0x1d0] sm:$0xff]
    %v165 = vld [vmem:[#allocation2 + $0x1d8] sm:$0xff]
    %v166 = vld [vmem:[#allocation2 + $0x1e0] sm:$0xff]
    %v167 = vld [vmem:[#allocation2 + $0x1e8] sm:$0xff]
    %v168 = vld [vmem:[#allocation2 + $0x1f0] sm:$0xff]
    %v169 = vld [vmem:[#allocation2 + $0x1f8] sm:$0xff]
    %v170 = vld [vmem:[#allocation2 + $0x200] sm:$0xff]
    %v171 = vld [vmem:[#allocation2 + $0x208] sm:$0xff]
    %v172 = vld [vmem:[#allocation2 + $0x210] sm:$0xff]
    %v173 = vld [vmem:[#allocation2 + $0x218] sm:$0xff]
    %v174 = vld [vmem:[#allocation2 + $0x220] sm:$0xff]
    %v175 = vld [vmem:[#allocation2 + $0x228] sm:$0xff]
    %v176 = vld [vmem:[#allocation2 + $0x230] sm:$0xff]
    %v177 = vld [vmem:[#allocation2 + $0x238] sm:$0xff]
    %v178 = vld [vmem:[#allocation2 + $0x240] sm:$0xff]
    %v179 = vld [vmem:[#allocation2 + $0x248] sm:$0xff]
    %v180 = vld [vmem:[#allocation2 + $0x250] sm:$0xff]
    %v181 = vld [vmem:[#allocation2 + $0x258] sm:$0xff]
    %v182 = vld [vmem:[#allocation2 + $0x260] sm:$0xff]
    %v183 = vld [vmem:[#allocation2 + $0x268] sm:$0xff]
    %v184 = vld [vmem:[#allocation2 + $0x270] sm:$0xff]
    %v185 = vld [vmem:[#allocation2 + $0x278] sm:$0xff]
    %v186 = vld [vmem:[#allocation2 + $0x280] sm:$0xff]
    %v187 = vld [vmem:[#allocation2 + $0x288] sm:$0xff]
    %v188 = vld [vmem:[#allocation2 + $0x290] sm:$0xff]
    %v189 = vld [vmem:[#allocation2 + $0x298] sm:$0xff]
    %v190 = vld [vmem:[#allocation2 + $0x2a0] sm:$0xff]
    %v191 = vld [vmem:[#allocation2 + $0x2a8] sm:$0xff]
    %v192 = vld [vmem:[#allocation2 + $0x2b0] sm:$0xff]
    %v193 = vld [vmem:[#allocation2 + $0x2b8] sm:$0xff]
    %v194 = vld [vmem:[#allocation2 + $0x2c0] sm:$0xff]
    %v195 = vld [vmem:[#allocation2 + $0x2c8] sm:$0xff]
    %v196 = vld [vmem:[#allocation2 + $0x2d0] sm:$0xff]
    %v197 = vld [vmem:[#allocation2 + $0x2d8] sm:$0xff]
    %v198 = vld [vmem:[#allocation2 + $0x2e0] sm:$0xff]
    %v199 = vld [vmem:[#allocation2 + $0x2e8] sm:$0xff]
    %v200 = vld [vmem:[#allocation2 + $0x2f0] sm:$0xff]
    %v201 = vld [vmem:[#allocation2 + $0x2f8] sm:$0xff]
    %v202 = vld [vmem:[#allocation2 + $0x300] sm:$0xff]
    %v203 = vld [vmem:[#allocation2 + $0x308] sm:$0xff]
    %v204 = vld [vmem:[#allocation2 + $0x310] sm:$0xff]
    %v205 = vld [vmem:[#allocation2 + $0x318] sm:$0xff]
    %v206 = vld [vmem:[#allocation2 + $0x320] sm:$0xff]
    %v207 = vld [vmem:[#allocation2 + $0x328] sm:$0xff]
    %v208 = vld [vmem:[#allocation2 + $0x330] sm:$0xff]
    %v209 = vld [vmem:[#allocation2 + $0x338] sm:$0xff]
    %v210 = vld [vmem:[#allocation2 + $0x340] sm:$0xff]
    %v211 = vld [vmem:[#allocation2 + $0x348] sm:$0xff]
    %v212 = vld [vmem:[#allocation2 + $0x350] sm:$0xff]
    %v213 = vld [vmem:[#allocation2 + $0x358] sm:$0xff]
    %v214 = vld [vmem:[#allocation2 + $0x360] sm:$0xff]
    %v215 = vld [vmem:[#allocation2 + $0x368] sm:$0xff]
    %v216 = vld [vmem:[#allocation2 + $0x370] sm:$0xff]
    %v217 = vld [vmem:[#allocation2 + $0x378] sm:$0xff]
    %v218 = vld [vmem:[#allocation2 + $0x380] sm:$0xff]
    %v219 = vld [vmem:[#allocation2 + $0x388] sm:$0xff]
    %v220 = vld [vmem:[#allocation2 + $0x390] sm:$0xff]
    %v221 = vld [vmem:[#allocation2 + $0x398] sm:$0xff]
    %v222 = vld [vmem:[#allocation2 + $0x3a0] sm:$0xff]
    %v223 = vld [vmem:[#allocation2 + $0x3a8] sm:$0xff]
    %v224 = vld [vmem:[#allocation2 + $0x3b0] sm:$0xff]
    %v225 = vld [vmem:[#allocation2 + $0x3b8] sm:$0xff]
    %v226 = vld [vmem:[#allocation2 + $0x3c0] sm:$0xff]
    %v227 = vld [vmem:[#allocation2 + $0x3c8] sm:$0xff]
    %v228 = vld [vmem:[#allocation2 + $0x3d0] sm:$0xff]
    %v229 = vld [vmem:[#allocation2 + $0x3d8] sm:$0xff]
    %v230 = vld [vmem:[#allocation2 + $0x3e0] sm:$0xff]
    %v231 = vld [vmem:[#allocation2 + $0x3e8] sm:$0xff]
    %v232 = vld [vmem:[#allocation2 + $0x3f0] sm:$0xff]
    %v233 = vld [vmem:[#allocation2 + $0x3f8] sm:$0xff]
    %v234 = vld [vmem:[#allocation2 + $0x400] sm:$0xff]
    %v235 = vld [vmem:[#allocation2 + $0x408] sm:$0xff]
    %v236 = vld [vmem:[#allocation2 + $0x410] sm:$0xff]
    %v237 = vld [vmem:[#allocation2 + $0x418] sm:$0xff]
    %v238 = vld [vmem:[#allocation2 + $0x420] sm:$0xff]
    %v239 = vld [vmem:[#allocation2 + $0x428] sm:$0xff]
    %v240 = vld [vmem:[#allocation2 + $0x430] sm:$0xff]
    %v241 = vld [vmem:[#allocation2 + $0x438] sm:$0xff]
    %v242 = vld [vmem:[#allocation2 + $0x440] sm:$0xff]
    %v243 = vld [vmem:[#allocation2 + $0x448] sm:$0xff]
    %v244 = vld [vmem:[#allocation2 + $0x450] sm:$0xff]
    %v245 = vld [vmem:[#allocation2 + $0x458] sm:$0xff]
    %v246 = vld [vmem:[#allocation2 + $0x460] sm:$0xff]
    %v247 = vld [vmem:[#allocation2 + $0x468] sm:$0xff]
    %v248 = vld [vmem:[#allocation2 + $0x470] sm:$0xff]
    %v249 = vld [vmem:[#allocation2 + $0x478] sm:$0xff]
    %v250 = vld [vmem:[#allocation2 + $0x480] sm:$0xff]
    %v251 = vld [vmem:[#allocation2 + $0x488] sm:$0xff]
    %v252 = vld [vmem:[#allocation2 + $0x490] sm:$0xff]
    %v253 = vld [vmem:[#allocation2 + $0x498] sm:$0xff]
    %v254 = vld [vmem:[#allocation2 + $0x4a0] sm:$0xff]
    %v255 = vld [vmem:[#allocation2 + $0x4a8] sm:$0xff]
    %v256 = vld [vmem:[#allocation2 + $0x4b0] sm:$0xff]
    %v257 = vld [vmem:[#allocation2 + $0x4b8] sm:$0xff]
    %v258 = vld [vmem:[#allocation2 + $0x4c0] sm:$0xff]
    %v259 = vld [vmem:[#allocation2 + $0x4c8] sm:$0xff]
    %v260 = vld [vmem:[#allocation2 + $0x4d0] sm:$0xff]
    %v261 = vld [vmem:[#allocation2 + $0x4d8] sm:$0xff]
    %v262 = vld [vmem:[#allocation2 + $0x4e0] sm:$0xff]
    %v263 = vld [vmem:[#allocation2 + $0x4e8] sm:$0xff]
    %v264 = vld [vmem:[#allocation2 + $0x4f0] sm:$0xff]
    %v265 = vld [vmem:[#allocation2 + $0x4f8] sm:$0xff]
    %v266 = vld [vmem:[#allocation2 + $0x500] sm:$0xff]
    %v267 = vld [vmem:[#allocation2 + $0x508] sm:$0xff]
    %v268 = vld [vmem:[#allocation2 + $0x510] sm:$0xff]
    %v269 = vld [vmem:[#allocation2 + $0x518] sm:$0xff]
    %v270 = vld [vmem:[#allocation2 + $0x520] sm:$0xff]
    %v271 = vld [vmem:[#allocation2 + $0x528] sm:$0xff]
    %v272 = vld [vmem:[#allocation2 + $0x530] sm:$0xff]
    %v273 = vld [vmem:[#allocation2 + $0x538] sm:$0xff]
    %v274 = vld [vmem:[#allocation2 + $0x540] sm:$0xff]
    %v275 = vld [vmem:[#allocation2 + $0x548] sm:$0xff]
    %v276 = vld [vmem:[#allocation2 + $0x550] sm:$0xff]
    %v277 = vld [vmem:[#allocation2 + $0x558] sm:$0xff]
    %v278 = vld [vmem:[#allocation2 + $0x560] sm:$0xff]
    %v279 = vld [vmem:[#allocation2 + $0x568] sm:$0xff]
    %v280 = vld [vmem:[#allocation2 + $0x570] sm:$0xff]
    %v281 = vld [vmem:[#allocation2 + $0x578] sm:$0xff]
    %v282 = vld [vmem:[#allocation2 + $0x580] sm:$0xff]
    %v283 = vld [vmem:[#allocation2 + $0x588] sm:$0xff]
    %v284 = vld [vmem:[#allocation2 + $0x590] sm:$0xff]
    %v285 = vld [vmem:[#allocation2 + $0x598] sm:$0xff]
    %v286 = vld [vmem:[#allocation2 + $0x5a0] sm:$0xff]
    %v287 = vld [vmem:[#allocation2 + $0x5a8] sm:$0xff]
    %v288 = vld [vmem:[#allocation2 + $0x5b0] sm:$0xff]
    %v289 = vld [vmem:[#allocation2 + $0x5b8] sm:$0xff]
    %v290 = vld [vmem:[#allocation2 + $0x5c0] sm:$0xff]
    %v291 = vld [vmem:[#allocation2 + $0x5c8] sm:$0xff]
    %v292 = vld [vmem:[#allocation2 + $0x5d0] sm:$0xff]
    %v293 = vld [vmem:[#allocation2 + $0x5d8] sm:$0xff]
    %v294 = vld [vmem:[#allocation2 + $0x5e0] sm:$0xff]
    %v295 = vld [vmem:[#allocation2 + $0x5e8] sm:$0xff]
    %v296 = vld [vmem:[#allocation2 + $0x5f0] sm:$0xff]
    %v297 = vld [vmem:[#allocation2 + $0x5f8] sm:$0xff]
    %v298 = vld [vmem:[#allocation2 + $0x600] sm:$0xff]
    %v299 = vld [vmem:[#allocation2 + $0x608] sm:$0xff]
    %v300 = vld [vmem:[#allocation2 + $0x610] sm:$0xff]
    %v301 = vld [vmem:[#allocation2 + $0x618] sm:$0xff]
    %v302 = vld [vmem:[#allocation2 + $0x620] sm:$0xff]
    %v303 = vld [vmem:[#allocation2 + $0x628] sm:$0xff]
    %v304 = vld [vmem:[#allocation2 + $0x630] sm:$0xff]
    %v305 = vld [vmem:[#allocation2 + $0x638] sm:$0xff]
    %v306 = vld [vmem:[%s2] sm:$0xf]
    %v308 = vlaneseq
    %v309 = vshrl.u32 %v308, 7
    %v310 = vsub.s32 0, %v309
    %v311 = vrot.slane %v306, %v310
    %v312 = vlaneseq
    %v313 = vshrl.u32 %v312, 7
    %v314 = vsub.s32 1, %v313
    %v315 = vrot.slane %v306, %v314
    %v316 = vlaneseq
    %v317 = vshrl.u32 %v316, 7
    %v318 = vsub.s32 2, %v317
    %v319 = vrot.slane %v306, %v318
    %v320 = vlaneseq
    %v321 = vshrl.u32 %v320, 7
    %v322 = vsub.s32 3, %v321
    %v323 = vrot.slane %v306, %v322
    %v528 = vunpack.c.l.b16 %v106
    %v529 = vunpack.c.h.b16 %v106
    %v530 = vunpack.c.l.b16 %v107
    %v531 = vunpack.c.h.b16 %v107
    %v532 = vunpack.c.l.b16 %v108
    %v533 = vunpack.c.h.b16 %v108
    %v534 = vunpack.c.l.b16 %v109
    %v535 = vunpack.c.h.b16 %v109
    %v536 = vunpack.c.l.b16 %v110
    %v537 = vunpack.c.h.b16 %v110
    %v538 = vunpack.c.l.b16 %v111
    %v539 = vunpack.c.h.b16 %v111
    %v540 = vunpack.c.l.b16 %v112
    %v541 = vunpack.c.h.b16 %v112
    %v542 = vunpack.c.l.b16 %v113
    %v543 = vunpack.c.h.b16 %v113
    %v544 = vunpack.c.l.b16 %v114
    %v545 = vunpack.c.h.b16 %v114
    %v546 = vunpack.c.l.b16 %v115
    %v547 = vunpack.c.h.b16 %v115
    %v548 = vunpack.c.l.b16 %v116
    %v549 = vunpack.c.h.b16 %v116
    %v550 = vunpack.c.l.b16 %v117
    %v551 = vunpack.c.h.b16 %v117
    %v552 = vunpack.c.l.b16 %v118
    %v553 = vunpack.c.h.b16 %v118
    %v554 = vunpack.c.l.b16 %v119
    %v555 = vunpack.c.h.b16 %v119
    %v556 = vunpack.c.l.b16 %v120
    %v557 = vunpack.c.h.b16 %v120
    %v558 = vunpack.c.l.b16 %v121
    %v559 = vunpack.c.h.b16 %v121
    %v560 = vunpack.c.l.b16 %v122
    %v561 = vunpack.c.h.b16 %v122
    %v562 = vunpack.c.l.b16 %v123
    %v563 = vunpack.c.h.b16 %v123
    %v564 = vunpack.c.l.b16 %v124
    %v565 = vunpack.c.h.b16 %v124
    %v566 = vunpack.c.l.b16 %v125
    %v567 = vunpack.c.h.b16 %v125
    %v568 = vunpack.c.l.b16 %v126
    %v569 = vunpack.c.h.b16 %v126
    %v570 = vunpack.c.l.b16 %v127
    %v571 = vunpack.c.h.b16 %v127
    %v572 = vunpack.c.l.b16 %v128
    %v573 = vunpack.c.h.b16 %v128
    %v574 = vunpack.c.l.b16 %v129
    %v575 = vunpack.c.h.b16 %v129
    %v576 = vunpack.c.l.b16 %v130
    %v577 = vunpack.c.h.b16 %v130
    %v578 = vunpack.c.l.b16 %v131
    %v579 = vunpack.c.h.b16 %v131
    %v580 = vunpack.c.l.b16 %v132
    %v581 = vunpack.c.h.b16 %v132
    %v582 = vunpack.c.l.b16 %v133
    %v583 = vunpack.c.h.b16 %v133
    %v584 = vunpack.c.l.b16 %v134
    %v585 = vunpack.c.h.b16 %v134
    %v586 = vunpack.c.l.b16 %v135
    %v587 = vunpack.c.h.b16 %v135
    %v588 = vunpack.c.l.b16 %v136
    %v589 = vunpack.c.h.b16 %v136
    %v590 = vunpack.c.l.b16 %v137
    %v591 = vunpack.c.h.b16 %v137
    %v592 = vunpack.c.l.b16 %v138
    %v593 = vunpack.c.h.b16 %v138
    %v594 = vunpack.c.l.b16 %v139
    %v595 = vunpack.c.h.b16 %v139
    %v596 = vunpack.c.l.b16 %v140
    %v597 = vunpack.c.h.b16 %v140
    %v598 = vunpack.c.l.b16 %v141
    %v599 = vunpack.c.h.b16 %v141
    %v600 = vunpack.c.l.b16 %v142
    %v601 = vunpack.c.h.b16 %v142
    %v602 = vunpack.c.l.b16 %v143
    %v603 = vunpack.c.h.b16 %v143
    %v604 = vunpack.c.l.b16 %v144
    %v605 = vunpack.c.h.b16 %v144
    %v606 = vunpack.c.l.b16 %v145
    %v607 = vunpack.c.h.b16 %v145
    %v608 = vunpack.c.l.b16 %v146
    %v609 = vunpack.c.h.b16 %v146
    %v610 = vunpack.c.l.b16 %v147
    %v611 = vunpack.c.h.b16 %v147
    %v612 = vunpack.c.l.b16 %v148
    %v613 = vunpack.c.h.b16 %v148
    %v614 = vunpack.c.l.b16 %v149
    %v615 = vunpack.c.h.b16 %v149
    %v616 = vunpack.c.l.b16 %v150
    %v617 = vunpack.c.h.b16 %v150
    %v618 = vunpack.c.l.b16 %v151
    %v619 = vunpack.c.h.b16 %v151
    %v620 = vunpack.c.l.b16 %v152
    %v621 = vunpack.c.h.b16 %v152
    %v622 = vunpack.c.l.b16 %v153
    %v623 = vunpack.c.h.b16 %v153
    %v624 = vunpack.c.l.b16 %v154
    %v625 = vunpack.c.h.b16 %v154
    %v626 = vunpack.c.l.b16 %v155
    %v627 = vunpack.c.h.b16 %v155
    %v628 = vunpack.c.l.b16 %v156
    %v629 = vunpack.c.h.b16 %v156
    %v630 = vunpack.c.l.b16 %v157
    %v631 = vunpack.c.h.b16 %v157
    %v632 = vunpack.c.l.b16 %v158
    %v633 = vunpack.c.h.b16 %v158
    %v634 = vunpack.c.l.b16 %v159
    %v635 = vunpack.c.h.b16 %v159
    %v636 = vunpack.c.l.b16 %v160
    %v637 = vunpack.c.h.b16 %v160
    %v638 = vunpack.c.l.b16 %v161
    %v639 = vunpack.c.h.b16 %v161
    %v640 = vunpack.c.l.b16 %v162
    %v641 = vunpack.c.h.b16 %v162
    %v642 = vunpack.c.l.b16 %v163
    %v643 = vunpack.c.h.b16 %v163
    %v644 = vunpack.c.l.b16 %v164
    %v645 = vunpack.c.h.b16 %v164
    %v646 = vunpack.c.l.b16 %v165
    %v647 = vunpack.c.h.b16 %v165
    %v648 = vunpack.c.l.b16 %v166
    %v649 = vunpack.c.h.b16 %v166
    %v650 = vunpack.c.l.b16 %v167
    %v651 = vunpack.c.h.b16 %v167
    %v652 = vunpack.c.l.b16 %v168
    %v653 = vunpack.c.h.b16 %v168
    %v654 = vunpack.c.l.b16 %v169
    %v655 = vunpack.c.h.b16 %v169
    %v656 = vunpack.c.l.b16 %v170
    %v657 = vunpack.c.h.b16 %v170
    %v658 = vunpack.c.l.b16 %v171
    %v659 = vunpack.c.h.b16 %v171
    %v660 = vunpack.c.l.b16 %v172
    %v661 = vunpack.c.h.b16 %v172
    %v662 = vunpack.c.l.b16 %v173
    %v663 = vunpack.c.h.b16 %v173
    %v664 = vunpack.c.l.b16 %v174
    %v665 = vunpack.c.h.b16 %v174
    %v666 = vunpack.c.l.b16 %v175
    %v667 = vunpack.c.h.b16 %v175
    %v668 = vunpack.c.l.b16 %v176
    %v669 = vunpack.c.h.b16 %v176
    %v670 = vunpack.c.l.b16 %v177
    %v671 = vunpack.c.h.b16 %v177
    %v672 = vunpack.c.l.b16 %v178
    %v673 = vunpack.c.h.b16 %v178
    %v674 = vunpack.c.l.b16 %v179
    %v675 = vunpack.c.h.b16 %v179
    %v676 = vunpack.c.l.b16 %v180
    %v677 = vunpack.c.h.b16 %v180
    %v678 = vunpack.c.l.b16 %v181
    %v679 = vunpack.c.h.b16 %v181
    %v680 = vunpack.c.l.b16 %v182
    %v681 = vunpack.c.h.b16 %v182
    %v682 = vunpack.c.l.b16 %v183
    %v683 = vunpack.c.h.b16 %v183
    %v684 = vunpack.c.l.b16 %v184
    %v685 = vunpack.c.h.b16 %v184
    %v686 = vunpack.c.l.b16 %v185
    %v687 = vunpack.c.h.b16 %v185
    %v688 = vunpack.c.l.b16 %v186
    %v689 = vunpack.c.h.b16 %v186
    %v690 = vunpack.c.l.b16 %v187
    %v691 = vunpack.c.h.b16 %v187
    %v692 = vunpack.c.l.b16 %v188
    %v693 = vunpack.c.h.b16 %v188
    %v694 = vunpack.c.l.b16 %v189
    %v695 = vunpack.c.h.b16 %v189
    %v696 = vunpack.c.l.b16 %v190
    %v697 = vunpack.c.h.b16 %v190
    %v698 = vunpack.c.l.b16 %v191
    %v699 = vunpack.c.h.b16 %v191
    %v700 = vunpack.c.l.b16 %v192
    %v701 = vunpack.c.h.b16 %v192
    %v702 = vunpack.c.l.b16 %v193
    %v703 = vunpack.c.h.b16 %v193
    %v704 = vunpack.c.l.b16 %v194
    %v705 = vunpack.c.h.b16 %v194
    %v706 = vunpack.c.l.b16 %v195
    %v707 = vunpack.c.h.b16 %v195
    %v708 = vunpack.c.l.b16 %v196
    %v709 = vunpack.c.h.b16 %v196
    %v710 = vunpack.c.l.b16 %v197
    %v711 = vunpack.c.h.b16 %v197
    %v712 = vunpack.c.l.b16 %v198
    %v713 = vunpack.c.h.b16 %v198
    %v714 = vunpack.c.l.b16 %v199
    %v715 = vunpack.c.h.b16 %v199
    %v716 = vunpack.c.l.b16 %v200
    %v717 = vunpack.c.h.b16 %v200
    %v718 = vunpack.c.l.b16 %v201
    %v719 = vunpack.c.h.b16 %v201
    %v720 = vunpack.c.l.b16 %v202
    %v721 = vunpack.c.h.b16 %v202
    %v722 = vunpack.c.l.b16 %v203
    %v723 = vunpack.c.h.b16 %v203
    %v724 = vunpack.c.l.b16 %v204
    %v725 = vunpack.c.h.b16 %v204
    %v726 = vunpack.c.l.b16 %v205
    %v727 = vunpack.c.h.b16 %v205
    %v728 = vunpack.c.l.b16 %v206
    %v729 = vunpack.c.h.b16 %v206
    %v730 = vunpack.c.l.b16 %v207
    %v731 = vunpack.c.h.b16 %v207
    %v732 = vunpack.c.l.b16 %v208
    %v733 = vunpack.c.h.b16 %v208
    %v734 = vunpack.c.l.b16 %v209
    %v735 = vunpack.c.h.b16 %v209
    %v736 = vunpack.c.l.b16 %v210
    %v737 = vunpack.c.h.b16 %v210
    %v738 = vunpack.c.l.b16 %v211
    %v739 = vunpack.c.h.b16 %v211
    %v740 = vunpack.c.l.b16 %v212
    %v741 = vunpack.c.h.b16 %v212
    %v742 = vunpack.c.l.b16 %v213
    %v743 = vunpack.c.h.b16 %v213
    %v744 = vunpack.c.l.b16 %v214
    %v745 = vunpack.c.h.b16 %v214
    %v746 = vunpack.c.l.b16 %v215
    %v747 = vunpack.c.h.b16 %v215
    %v748 = vunpack.c.l.b16 %v216
    %v749 = vunpack.c.h.b16 %v216
    %v750 = vunpack.c.l.b16 %v217
    %v751 = vunpack.c.h.b16 %v217
    %v752 = vunpack.c.l.b16 %v218
    %v753 = vunpack.c.h.b16 %v218
    %v754 = vunpack.c.l.b16 %v219
    %v755 = vunpack.c.h.b16 %v219
    %v756 = vunpack.c.l.b16 %v220
    %v757 = vunpack.c.h.b16 %v220
    %v758 = vunpack.c.l.b16 %v221
    %v759 = vunpack.c.h.b16 %v221
    %v760 = vunpack.c.l.b16 %v222
    %v761 = vunpack.c.h.b16 %v222
    %v762 = vunpack.c.l.b16 %v223
    %v763 = vunpack.c.h.b16 %v223
    %v764 = vunpack.c.l.b16 %v224
    %v765 = vunpack.c.h.b16 %v224
    %v766 = vunpack.c.l.b16 %v225
    %v767 = vunpack.c.h.b16 %v225
    %v768 = vunpack.c.l.b16 %v226
    %v769 = vunpack.c.h.b16 %v226
    %v770 = vunpack.c.l.b16 %v227
    %v771 = vunpack.c.h.b16 %v227
    %v772 = vunpack.c.l.b16 %v228
    %v773 = vunpack.c.h.b16 %v228
    %v774 = vunpack.c.l.b16 %v229
    %v775 = vunpack.c.h.b16 %v229
    %v776 = vunpack.c.l.b16 %v230
    %v777 = vunpack.c.h.b16 %v230
    %v778 = vunpack.c.l.b16 %v231
    %v779 = vunpack.c.h.b16 %v231
    %v780 = vunpack.c.l.b16 %v232
    %v781 = vunpack.c.h.b16 %v232
    %v782 = vunpack.c.l.b16 %v233
    %v783 = vunpack.c.h.b16 %v233
    %v784 = vunpack.c.l.b16 %v234
    %v785 = vunpack.c.h.b16 %v234
    %v786 = vunpack.c.l.b16 %v235
    %v787 = vunpack.c.h.b16 %v235
    %v788 = vunpack.c.l.b16 %v236
    %v789 = vunpack.c.h.b16 %v236
    %v790 = vunpack.c.l.b16 %v237
    %v791 = vunpack.c.h.b16 %v237
    %v792 = vunpack.c.l.b16 %v238
    %v793 = vunpack.c.h.b16 %v238
    %v794 = vunpack.c.l.b16 %v239
    %v795 = vunpack.c.h.b16 %v239
    %v796 = vunpack.c.l.b16 %v240
    %v797 = vunpack.c.h.b16 %v240
    %v798 = vunpack.c.l.b16 %v241
    %v799 = vunpack.c.h.b16 %v241
    %v800 = vunpack.c.l.b16 %v242
    %v801 = vunpack.c.h.b16 %v242
    %v802 = vunpack.c.l.b16 %v243
    %v803 = vunpack.c.h.b16 %v243
    %v804 = vunpack.c.l.b16 %v244
    %v805 = vunpack.c.h.b16 %v244
    %v806 = vunpack.c.l.b16 %v245
    %v807 = vunpack.c.h.b16 %v245
    %v808 = vunpack.c.l.b16 %v246
    %v809 = vunpack.c.h.b16 %v246
    %v810 = vunpack.c.l.b16 %v247
    %v811 = vunpack.c.h.b16 %v247
    %v812 = vunpack.c.l.b16 %v248
    %v813 = vunpack.c.h.b16 %v248
    %v814 = vunpack.c.l.b16 %v249
    %v815 = vunpack.c.h.b16 %v249
    %v816 = vunpack.c.l.b16 %v250
    %v817 = vunpack.c.h.b16 %v250
    %v818 = vunpack.c.l.b16 %v251
    %v819 = vunpack.c.h.b16 %v251
    %v820 = vunpack.c.l.b16 %v252
    %v821 = vunpack.c.h.b16 %v252
    %v822 = vunpack.c.l.b16 %v253
    %v823 = vunpack.c.h.b16 %v253
    %v824 = vunpack.c.l.b16 %v254
    %v825 = vunpack.c.h.b16 %v254
    %v826 = vunpack.c.l.b16 %v255
    %v827 = vunpack.c.h.b16 %v255
    %v828 = vunpack.c.l.b16 %v256
    %v829 = vunpack.c.h.b16 %v256
    %v830 = vunpack.c.l.b16 %v257
    %v831 = vunpack.c.h.b16 %v257
    %v832 = vunpack.c.l.b16 %v258
    %v833 = vunpack.c.h.b16 %v258
    %v834 = vunpack.c.l.b16 %v259
    %v835 = vunpack.c.h.b16 %v259
    %v836 = vunpack.c.l.b16 %v260
    %v837 = vunpack.c.h.b16 %v260
    %v838 = vunpack.c.l.b16 %v261
    %v839 = vunpack.c.h.b16 %v261
    %v840 = vunpack.c.l.b16 %v262
    %v841 = vunpack.c.h.b16 %v262
    %v842 = vunpack.c.l.b16 %v263
    %v843 = vunpack.c.h.b16 %v263
    %v844 = vunpack.c.l.b16 %v264
    %v845 = vunpack.c.h.b16 %v264
    %v846 = vunpack.c.l.b16 %v265
    %v847 = vunpack.c.h.b16 %v265
    %v848 = vunpack.c.l.b16 %v266
    %v849 = vunpack.c.h.b16 %v266
    %v850 = vunpack.c.l.b16 %v267
    %v851 = vunpack.c.h.b16 %v267
    %v852 = vunpack.c.l.b16 %v268
    %v853 = vunpack.c.h.b16 %v268
    %v854 = vunpack.c.l.b16 %v269
    %v855 = vunpack.c.h.b16 %v269
    %v856 = vunpack.c.l.b16 %v270
    %v857 = vunpack.c.h.b16 %v270
    %v858 = vunpack.c.l.b16 %v271
    %v859 = vunpack.c.h.b16 %v271
    %v860 = vunpack.c.l.b16 %v272
    %v861 = vunpack.c.h.b16 %v272
    %v862 = vunpack.c.l.b16 %v273
    %v863 = vunpack.c.h.b16 %v273
    %v864 = vunpack.c.l.b16 %v274
    %v865 = vunpack.c.h.b16 %v274
    %v866 = vunpack.c.l.b16 %v275
    %v867 = vunpack.c.h.b16 %v275
    %v868 = vunpack.c.l.b16 %v276
    %v869 = vunpack.c.h.b16 %v276
    %v870 = vunpack.c.l.b16 %v277
    %v871 = vunpack.c.h.b16 %v277
    %v872 = vunpack.c.l.b16 %v278
    %v873 = vunpack.c.h.b16 %v278
    %v874 = vunpack.c.l.b16 %v279
    %v875 = vunpack.c.h.b16 %v279
    %v876 = vunpack.c.l.b16 %v280
    %v877 = vunpack.c.h.b16 %v280
    %v878 = vunpack.c.l.b16 %v281
    %v879 = vunpack.c.h.b16 %v281
    %v880 = vunpack.c.l.b16 %v282
    %v881 = vunpack.c.h.b16 %v282
    %v882 = vunpack.c.l.b16 %v283
    %v883 = vunpack.c.h.b16 %v283
    %v884 = vunpack.c.l.b16 %v284
    %v885 = vunpack.c.h.b16 %v284
    %v886 = vunpack.c.l.b16 %v285
    %v887 = vunpack.c.h.b16 %v285
    %v888 = vunpack.c.l.b16 %v286
    %v889 = vunpack.c.h.b16 %v286
    %v890 = vunpack.c.l.b16 %v287
    %v891 = vunpack.c.h.b16 %v287
    %v892 = vunpack.c.l.b16 %v288
    %v893 = vunpack.c.h.b16 %v288
    %v894 = vunpack.c.l.b16 %v289
    %v895 = vunpack.c.h.b16 %v289
    %v896 = vunpack.c.l.b16 %v290
    %v897 = vunpack.c.h.b16 %v290
    %v898 = vunpack.c.l.b16 %v291
    %v899 = vunpack.c.h.b16 %v291
    %v900 = vunpack.c.l.b16 %v292
    %v901 = vunpack.c.h.b16 %v292
    %v902 = vunpack.c.l.b16 %v293
    %v903 = vunpack.c.h.b16 %v293
    %v904 = vunpack.c.l.b16 %v294
    %v905 = vunpack.c.h.b16 %v294
    %v906 = vunpack.c.l.b16 %v295
    %v907 = vunpack.c.h.b16 %v295
    %v908 = vunpack.c.l.b16 %v296
    %v909 = vunpack.c.h.b16 %v296
    %v910 = vunpack.c.l.b16 %v297
    %v911 = vunpack.c.h.b16 %v297
    %v912 = vunpack.c.l.b16 %v298
    %v913 = vunpack.c.h.b16 %v298
    %v914 = vunpack.c.l.b16 %v299
    %v915 = vunpack.c.h.b16 %v299
    %v916 = vunpack.c.l.b16 %v300
    %v917 = vunpack.c.h.b16 %v300
    %v918 = vunpack.c.l.b16 %v301
    %v919 = vunpack.c.h.b16 %v301
    %v920 = vunpack.c.l.b16 %v302
    %v921 = vunpack.c.h.b16 %v302
    %v922 = vunpack.c.l.b16 %v303
    %v923 = vunpack.c.h.b16 %v303
    %v924 = vunpack.c.l.b16 %v304
    %v925 = vunpack.c.h.b16 %v304
    %v926 = vunpack.c.l.b16 %v305
    %v927 = vunpack.c.h.b16 %v305
    %v928 = vpack.c.b16 %v532, %v528
    %v929 = vpack.c.b16 %v533, %v529
    %v930 = vpack.c.b16 %v534, %v530
    %v931 = vpack.c.b16 %v535, %v531
    %v932 = vpack.c.b16 %v540, %v536
    %v933 = vpack.c.b16 %v541, %v537
    %v934 = vpack.c.b16 %v542, %v538
    %v935 = vpack.c.b16 %v543, %v539
    %v936 = vpack.c.b16 %v548, %v544
    %v937 = vpack.c.b16 %v549, %v545
    %v938 = vpack.c.b16 %v550, %v546
    %v939 = vpack.c.b16 %v551, %v547
    %v940 = vpack.c.b16 %v556, %v552
    %v941 = vpack.c.b16 %v557, %v553
    %v942 = vpack.c.b16 %v558, %v554
    %v943 = vpack.c.b16 %v559, %v555
    %v944 = vpack.c.b16 %v564, %v560
    %v945 = vpack.c.b16 %v565, %v561
    %v946 = vpack.c.b16 %v566, %v562
    %v947 = vpack.c.b16 %v567, %v563
    %v948 = vpack.c.b16 %v572, %v568
    %v949 = vpack.c.b16 %v573, %v569
    %v950 = vpack.c.b16 %v574, %v570
    %v951 = vpack.c.b16 %v575, %v571
    %v952 = vpack.c.b16 %v580, %v576
    %v953 = vpack.c.b16 %v581, %v577
    %v954 = vpack.c.b16 %v582, %v578
    %v955 = vpack.c.b16 %v583, %v579
    %v956 = vpack.c.b16 %v588, %v584
    %v957 = vpack.c.b16 %v589, %v585
    %v958 = vpack.c.b16 %v590, %v586
    %v959 = vpack.c.b16 %v591, %v587
    %v960 = vpack.c.b16 %v596, %v592
    %v961 = vpack.c.b16 %v597, %v593
    %v962 = vpack.c.b16 %v598, %v594
    %v963 = vpack.c.b16 %v599, %v595
    %v964 = vpack.c.b16 %v604, %v600
    %v965 = vpack.c.b16 %v605, %v601
    %v966 = vpack.c.b16 %v606, %v602
    %v967 = vpack.c.b16 %v607, %v603
    %v968 = vpack.c.b16 %v612, %v608
    %v969 = vpack.c.b16 %v613, %v609
    %v970 = vpack.c.b16 %v614, %v610
    %v971 = vpack.c.b16 %v615, %v611
    %v972 = vpack.c.b16 %v620, %v616
    %v973 = vpack.c.b16 %v621, %v617
    %v974 = vpack.c.b16 %v622, %v618
    %v975 = vpack.c.b16 %v623, %v619
    %v976 = vpack.c.b16 %v628, %v624
    %v977 = vpack.c.b16 %v629, %v625
    %v978 = vpack.c.b16 %v630, %v626
    %v979 = vpack.c.b16 %v631, %v627
    %v980 = vpack.c.b16 %v636, %v632
    %v981 = vpack.c.b16 %v637, %v633
    %v982 = vpack.c.b16 %v638, %v634
    %v983 = vpack.c.b16 %v639, %v635
    %v984 = vpack.c.b16 %v644, %v640
    %v985 = vpack.c.b16 %v645, %v641
    %v986 = vpack.c.b16 %v646, %v642
    %v987 = vpack.c.b16 %v647, %v643
    %v988 = vpack.c.b16 %v652, %v648
    %v989 = vpack.c.b16 %v653, %v649
    %v990 = vpack.c.b16 %v654, %v650
    %v991 = vpack.c.b16 %v655, %v651
    %v992 = vpack.c.b16 %v660, %v656
    %v993 = vpack.c.b16 %v661, %v657
    %v994 = vpack.c.b16 %v662, %v658
    %v995 = vpack.c.b16 %v663, %v659
    %v996 = vpack.c.b16 %v668, %v664
    %v997 = vpack.c.b16 %v669, %v665
    %v998 = vpack.c.b16 %v670, %v666
    %v999 = vpack.c.b16 %v671, %v667
    %v1000 = vpack.c.b16 %v676, %v672
    %v1001 = vpack.c.b16 %v677, %v673
    %v1002 = vpack.c.b16 %v678, %v674
    %v1003 = vpack.c.b16 %v679, %v675
    %v1004 = vpack.c.b16 %v684, %v680
    %v1005 = vpack.c.b16 %v685, %v681
    %v1006 = vpack.c.b16 %v686, %v682
    %v1007 = vpack.c.b16 %v687, %v683
    %v1008 = vpack.c.b16 %v692, %v688
    %v1009 = vpack.c.b16 %v693, %v689
    %v1010 = vpack.c.b16 %v694, %v690
    %v1011 = vpack.c.b16 %v695, %v691
    %v1012 = vpack.c.b16 %v700, %v696
    %v1013 = vpack.c.b16 %v701, %v697
    %v1014 = vpack.c.b16 %v702, %v698
    %v1015 = vpack.c.b16 %v703, %v699
    %v1016 = vpack.c.b16 %v708, %v704
    %v1017 = vpack.c.b16 %v709, %v705
    %v1018 = vpack.c.b16 %v710, %v706
    %v1019 = vpack.c.b16 %v711, %v707
    %v1020 = vpack.c.b16 %v716, %v712
    %v1021 = vpack.c.b16 %v717, %v713
    %v1022 = vpack.c.b16 %v718, %v714
    %v1023 = vpack.c.b16 %v719, %v715
    %v1024 = vpack.c.b16 %v724, %v720
    %v1025 = vpack.c.b16 %v725, %v721
    %v1026 = vpack.c.b16 %v726, %v722
    %v1027 = vpack.c.b16 %v727, %v723
    %v1028 = vpack.c.b16 %v732, %v728
    %v1029 = vpack.c.b16 %v733, %v729
    %v1030 = vpack.c.b16 %v734, %v730
    %v1031 = vpack.c.b16 %v735, %v731
    %v1032 = vpack.c.b16 %v740, %v736
    %v1033 = vpack.c.b16 %v741, %v737
    %v1034 = vpack.c.b16 %v742, %v738
    %v1035 = vpack.c.b16 %v743, %v739
    %v1036 = vpack.c.b16 %v748, %v744
    %v1037 = vpack.c.b16 %v749, %v745
    %v1038 = vpack.c.b16 %v750, %v746
    %v1039 = vpack.c.b16 %v751, %v747
    %v1040 = vpack.c.b16 %v756, %v752
    %v1041 = vpack.c.b16 %v757, %v753
    %v1042 = vpack.c.b16 %v758, %v754
    %v1043 = vpack.c.b16 %v759, %v755
    %v1044 = vpack.c.b16 %v764, %v760
    %v1045 = vpack.c.b16 %v765, %v761
    %v1046 = vpack.c.b16 %v766, %v762
    %v1047 = vpack.c.b16 %v767, %v763
    %v1048 = vpack.c.b16 %v772, %v768
    %v1049 = vpack.c.b16 %v773, %v769
    %v1050 = vpack.c.b16 %v774, %v770
    %v1051 = vpack.c.b16 %v775, %v771
    %v1052 = vpack.c.b16 %v780, %v776
    %v1053 = vpack.c.b16 %v781, %v777
    %v1054 = vpack.c.b16 %v782, %v778
    %v1055 = vpack.c.b16 %v783, %v779
    %v1056 = vpack.c.b16 %v788, %v784
    %v1057 = vpack.c.b16 %v789, %v785
    %v1058 = vpack.c.b16 %v790, %v786
    %v1059 = vpack.c.b16 %v791, %v787
    %v1060 = vpack.c.b16 %v796, %v792
    %v1061 = vpack.c.b16 %v797, %v793
    %v1062 = vpack.c.b16 %v798, %v794
    %v1063 = vpack.c.b16 %v799, %v795
    %v1064 = vpack.c.b16 %v804, %v800
    %v1065 = vpack.c.b16 %v805, %v801
    %v1066 = vpack.c.b16 %v806, %v802
    %v1067 = vpack.c.b16 %v807, %v803
    %v1068 = vpack.c.b16 %v812, %v808
    %v1069 = vpack.c.b16 %v813, %v809
    %v1070 = vpack.c.b16 %v814, %v810
    %v1071 = vpack.c.b16 %v815, %v811
    %v1072 = vpack.c.b16 %v820, %v816
    %v1073 = vpack.c.b16 %v821, %v817
    %v1074 = vpack.c.b16 %v822, %v818
    %v1075 = vpack.c.b16 %v823, %v819
    %v1076 = vpack.c.b16 %v828, %v824
    %v1077 = vpack.c.b16 %v829, %v825
    %v1078 = vpack.c.b16 %v830, %v826
    %v1079 = vpack.c.b16 %v831, %v827
    %v1080 = vpack.c.b16 %v836, %v832
    %v1081 = vpack.c.b16 %v837, %v833
    %v1082 = vpack.c.b16 %v838, %v834
    %v1083 = vpack.c.b16 %v839, %v835
    %v1084 = vpack.c.b16 %v844, %v840
    %v1085 = vpack.c.b16 %v845, %v841
    %v1086 = vpack.c.b16 %v846, %v842
    %v1087 = vpack.c.b16 %v847, %v843
    %v1088 = vpack.c.b16 %v852, %v848
    %v1089 = vpack.c.b16 %v853, %v849
    %v1090 = vpack.c.b16 %v854, %v850
    %v1091 = vpack.c.b16 %v855, %v851
    %v1092 = vpack.c.b16 %v860, %v856
    %v1093 = vpack.c.b16 %v861, %v857
    %v1094 = vpack.c.b16 %v862, %v858
    %v1095 = vpack.c.b16 %v863, %v859
    %v1096 = vpack.c.b16 %v868, %v864
    %v1097 = vpack.c.b16 %v869, %v865
    %v1098 = vpack.c.b16 %v870, %v866
    %v1099 = vpack.c.b16 %v871, %v867
    %v1100 = vpack.c.b16 %v876, %v872
    %v1101 = vpack.c.b16 %v877, %v873
    %v1102 = vpack.c.b16 %v878, %v874
    %v1103 = vpack.c.b16 %v879, %v875
    %v1104 = vpack.c.b16 %v884, %v880
    %v1105 = vpack.c.b16 %v885, %v881
    %v1106 = vpack.c.b16 %v886, %v882
    %v1107 = vpack.c.b16 %v887, %v883
    %v1108 = vpack.c.b16 %v892, %v888
    %v1109 = vpack.c.b16 %v893, %v889
    %v1110 = vpack.c.b16 %v894, %v890
    %v1111 = vpack.c.b16 %v895, %v891
    %v1112 = vpack.c.b16 %v900, %v896
    %v1113 = vpack.c.b16 %v901, %v897
    %v1114 = vpack.c.b16 %v902, %v898
    %v1115 = vpack.c.b16 %v903, %v899
    %v1116 = vpack.c.b16 %v908, %v904
    %v1117 = vpack.c.b16 %v909, %v905
    %v1118 = vpack.c.b16 %v910, %v906
    %v1119 = vpack.c.b16 %v911, %v907
    %v1120 = vpack.c.b16 %v916, %v912
    %v1121 = vpack.c.b16 %v917, %v913
    %v1122 = vpack.c.b16 %v918, %v914
    %v1123 = vpack.c.b16 %v919, %v915
    %v1124 = vpack.c.b16 %v924, %v920
    %v1125 = vpack.c.b16 %v925, %v921
    %v1126 = vpack.c.b16 %v926, %v922
    %v1127 = vpack.c.b16 %v927, %v923
    %vm1328 = vcmask 261120
    %v1330 = vsel %vm1328, %v105, 0
    %1332 = vmatprep.subr.bf16.mxu0 %v929
    %1333 = vmatpush1.bf16.msra.mxu0 %v928
    %1334 = vmatprep.subr.bf16.mxu0 %v933
    %1335 = vmatpush1.bf16.msra.mxu0 %v932
    %1336 = vmatprep.subr.bf16.mxu0 %v937
    %1337 = vmatpush1.bf16.msra.mxu0 %v936
    %1338 = vmatprep.subr.bf16.mxu0 %v941
    %1339 = vmatpush1.bf16.msra.mxu0 %v940
    %1340 = vmatprep.subr.bf16.mxu0 %v945
    %1341 = vmatpush1.bf16.msra.mxu0 %v944
    %1342 = vmatprep.subr.bf16.mxu0 %v949
    %1343 = vmatpush1.bf16.msra.mxu0 %v948
    %1344 = vmatprep.subr.bf16.mxu0 %v953
    %1345 = vmatpush1.bf16.msra.mxu0 %v952
    %1346 = vmatprep.subr.bf16.mxu0 %v957
    %1347 = vmatpush1.bf16.msra.mxu0 %v956
    %1348 = vmatprep.subr.bf16.mxu0 %v961
    %1349 = vmatpush1.bf16.msra.mxu0 %v960
    %1350 = vmatprep.subr.bf16.mxu0 %v965
    %1351 = vmatpush1.bf16.msra.mxu0 %v964
    %1352 = vmatprep.subr.bf16.mxu0 %v969
    %1353 = vmatpush1.bf16.msra.mxu0 %v968
    %1354 = vmatprep.subr.bf16.mxu0 %v973
    %1355 = vmatpush1.bf16.msra.mxu0 %v972
    %1356 = vmatprep.subr.bf16.mxu0 %v977
    %1357 = vmatpush1.bf16.msra.mxu0 %v976
    %1358 = vmatprep.subr.bf16.mxu0 %v981
    %1359 = vmatpush1.bf16.msra.mxu0 %v980
    %1360 = vmatprep.subr.bf16.mxu0 %v985
    %1361 = vmatpush1.bf16.msra.mxu0 %v984
    %1362 = vmatprep.subr.bf16.mxu0 %v989
    %1363 = vmatpush1.bf16.msra.mxu0 %v988
    %1364 = vmatprep.mubr.bf16.mxu0 %v100
    %1365 = vmatmul.mubr.bf16.gmra.mrb[0].mxu0 %v99
    %v1366 = vpop.f32.mrb[0].mxu0
    %v1367 = vadd.f32 %v311, %v1366
    %v1368 = vpop.f32.mrb[0].mxu0
    %v1369 = vadd.f32 %v315, %v1368
    %v1370 = vpop.f32.mrb[0].mxu0
    %v1371 = vpop.f32.mrb[0].mxu0
    %1372 = vdwg.mxu0
    %1373 = vmatprep.subr.bf16.mxu0 %v993
    %1374 = vmatpush1.bf16.msra.mxu0 %v992
    %1375 = vmatprep.subr.bf16.mxu0 %v997
    %1376 = vmatpush1.bf16.msra.mxu0 %v996
    %1377 = vmatprep.subr.bf16.mxu0 %v1001
    %1378 = vmatpush1.bf16.msra.mxu0 %v1000
    %1379 = vmatprep.subr.bf16.mxu0 %v1005
    %1380 = vmatpush1.bf16.msra.mxu0 %v1004
    %1381 = vmatprep.subr.bf16.mxu0 %v1009
    %1382 = vmatpush1.bf16.msra.mxu0 %v1008
    %1383 = vmatprep.subr.bf16.mxu0 %v1013
    %1384 = vmatpush1.bf16.msra.mxu0 %v1012
    %1385 = vmatprep.subr.bf16.mxu0 %v1017
    %1386 = vmatpush1.bf16.msra.mxu0 %v1016
    %1387 = vmatprep.subr.bf16.mxu0 %v1021
    %1388 = vmatpush1.bf16.msra.mxu0 %v1020
    %1389 = vmatprep.subr.bf16.mxu0 %v1025
    %1390 = vmatpush1.bf16.msra.mxu0 %v1024
    %1391 = vmatprep.subr.bf16.mxu0 %v1029
    %1392 = vmatpush1.bf16.msra.mxu0 %v1028
    %1393 = vmatprep.subr.bf16.mxu0 %v1033
    %1394 = vmatpush1.bf16.msra.mxu0 %v1032
    %1395 = vmatprep.subr.bf16.mxu0 %v1037
    %1396 = vmatpush1.bf16.msra.mxu0 %v1036
    %1397 = vmatprep.subr.bf16.mxu0 %v1041
    %1398 = vmatpush1.bf16.msra.mxu0 %v1040
    %1399 = vmatprep.subr.bf16.mxu0 %v1045
    %1400 = vmatpush1.bf16.msra.mxu0 %v1044
    %1401 = vmatprep.subr.bf16.mxu0 %v1049
    %1402 = vmatpush1.bf16.msra.mxu0 %v1048
    %1403 = vmatprep.subr.bf16.mxu0 %v1053
    %1404 = vmatpush1.bf16.msra.mxu0 %v1052
    %1405 = vmatprep.mubr.bf16.mxu0 %v102
    %1406 = vmatmul.mubr.bf16.gmra.mrb[0].mxu0 %v101
    %v1407 = vpop.f32.mrb[0].mxu0
    %v1408 = vadd.f32 %v1367, %v1407
    %v1409 = vpop.f32.mrb[0].mxu0
    %v1410 = vadd.f32 %v1369, %v1409
    %v1411 = vpop.f32.mrb[0].mxu0
    %v1412 = vpop.f32.mrb[0].mxu0
    %1413 = vdwg.mxu0
    %1414 = vmatprep.subr.bf16.mxu0 %v1057
    %1415 = vmatpush1.bf16.msra.mxu0 %v1056
    %1416 = vmatprep.subr.bf16.mxu0 %v1061
    %1417 = vmatpush1.bf16.msra.mxu0 %v1060
    %1418 = vmatprep.subr.bf16.mxu0 %v1065
    %1419 = vmatpush1.bf16.msra.mxu0 %v1064
    %1420 = vmatprep.subr.bf16.mxu0 %v1069
    %1421 = vmatpush1.bf16.msra.mxu0 %v1068
    %1422 = vmatprep.subr.bf16.mxu0 %v1073
    %1423 = vmatpush1.bf16.msra.mxu0 %v1072
    %1424 = vmatprep.subr.bf16.mxu0 %v1077
    %1425 = vmatpush1.bf16.msra.mxu0 %v1076
    %1426 = vmatprep.subr.bf16.mxu0 %v1081
    %1427 = vmatpush1.bf16.msra.mxu0 %v1080
    %1428 = vmatprep.subr.bf16.mxu0 %v1085
    %1429 = vmatpush1.bf16.msra.mxu0 %v1084
    %1430 = vmatprep.subr.bf16.mxu0 %v1089
    %1431 = vmatpush1.bf16.msra.mxu0 %v1088
    %1432 = vmatprep.subr.bf16.mxu0 %v1093
    %1433 = vmatpush1.bf16.msra.mxu0 %v1092
    %1434 = vmatprep.subr.bf16.mxu0 %v1097
    %1435 = vmatpush1.bf16.msra.mxu0 %v1096
    %1436 = vmatprep.subr.bf16.mxu0 %v1101
    %1437 = vmatpush1.bf16.msra.mxu0 %v1100
    %1438 = vmatprep.subr.bf16.mxu0 %v1105
    %1439 = vmatpush1.bf16.msra.mxu0 %v1104
    %1440 = vmatprep.subr.bf16.mxu0 %v1109
    %1441 = vmatpush1.bf16.msra.mxu0 %v1108
    %1442 = vmatprep.subr.bf16.mxu0 %v1113
    %1443 = vmatpush1.bf16.msra.mxu0 %v1112
    %1444 = vmatprep.subr.bf16.mxu0 %v1117
    %1445 = vmatpush1.bf16.msra.mxu0 %v1116
    %1446 = vmatprep.mubr.bf16.mxu0 %v104
    %1447 = vmatmul.mubr.bf16.gmra.mrb[0].mxu0 %v103
    %v1448 = vpop.f32.mrb[0].mxu0
    %v1449 = vadd.f32 %v1408, %v1448
    %v1450 = vpop.f32.mrb[0].mxu0
    %v1451 = vadd.f32 %v1410, %v1450
    %v1452 = vpop.f32.mrb[0].mxu0
    %v1453 = vpop.f32.mrb[0].mxu0
    %1454 = vdwg.mxu0
    %1455 = vmatprep.subr.bf16.mxu0 %v1121
    %1456 = vmatpush1.bf16.msra.mxu0 %v1120
    %1457 = vmatprep.subr.bf16.mxu0 %v1125
    %1458 = vmatpush1.bf16.msra.mxu0 %v1124
    %1459 = vmatprep.subr.bf16.mxu0 0
    %1460 = vmatpush1.bf16.msra.mxu0 0
    %1461 = vmatprep.subr.bf16.mxu0 0
    %1462 = vmatpush1.bf16.msra.mxu0 0
    %1463 = vmatprep.subr.bf16.mxu0 0
    %1464 = vmatpush1.bf16.msra.mxu0 0
    %1465 = vmatprep.subr.bf16.mxu0 0
    %1466 = vmatpush1.bf16.msra.mxu0 0
    %1467 = vmatprep.subr.bf16.mxu0 0
    %1468 = vmatpush1.bf16.msra.mxu0 0
    %1469 = vmatprep.subr.bf16.mxu0 0
    %1470 = vmatpush1.bf16.msra.mxu0 0
    %1471 = vmatprep.subr.bf16.mxu0 0
    %1472 = vmatpush1.bf16.msra.mxu0 0
    %1473 = vmatprep.subr.bf16.mxu0 0
    %1474 = vmatpush1.bf16.msra.mxu0 0
    %1475 = vmatprep.subr.bf16.mxu0 0
    %1476 = vmatpush1.bf16.msra.mxu0 0
    %1477 = vmatprep.subr.bf16.mxu0 0
    %1478 = vmatpush1.bf16.msra.mxu0 0
    %1479 = vmatprep.subr.bf16.mxu0 0
    %1480 = vmatpush1.bf16.msra.mxu0 0
    %1481 = vmatprep.subr.bf16.mxu0 0
    %1482 = vmatpush1.bf16.msra.mxu0 0
    %1483 = vmatprep.subr.bf16.mxu0 0
    %1484 = vmatpush1.bf16.msra.mxu0 0
    %1485 = vmatprep.subr.bf16.mxu0 0
    %1486 = vmatpush1.bf16.msra.mxu0 0
    %1487 = vmatprep.mubr.bf16.mxu0 0
    %1488 = vmatmul.mubr.bf16.gmra.mrb[0].mxu0 %v1330
    %v1489 = vpop.f32.mrb[0].mxu0
    %v1490 = vadd.f32 %v1449, %v1489
    %v1491 = vpop.f32.mrb[0].mxu0
    %v1492 = vadd.f32 %v1451, %v1491
    %v1493 = vpop.f32.mrb[0].mxu0
    %v1494 = vpop.f32.mrb[0].mxu0
    %1495 = vdwg.mxu0
    %1496 = vmatprep.subr.bf16.mxu0 %v931
    %1497 = vmatpush1.bf16.msra.mxu0 %v930
    %1498 = vmatprep.subr.bf16.mxu0 %v935
    %1499 = vmatpush1.bf16.msra.mxu0 %v934
    %1500 = vmatprep.subr.bf16.mxu0 %v939
    %1501 = vmatpush1.bf16.msra.mxu0 %v938
    %1502 = vmatprep.subr.bf16.mxu0 %v943
    %1503 = vmatpush1.bf16.msra.mxu0 %v942
    %1504 = vmatprep.subr.bf16.mxu0 %v947
    %1505 = vmatpush1.bf16.msra.mxu0 %v946
    %1506 = vmatprep.subr.bf16.mxu0 %v951
    %1507 = vmatpush1.bf16.msra.mxu0 %v950
    %1508 = vmatprep.subr.bf16.mxu0 %v955
    %1509 = vmatpush1.bf16.msra.mxu0 %v954
    %1510 = vmatprep.subr.bf16.mxu0 %v959
    %1511 = vmatpush1.bf16.msra.mxu0 %v958
    %1512 = vmatprep.subr.bf16.mxu0 %v963
    %1513 = vmatpush1.bf16.msra.mxu0 %v962
    %1514 = vmatprep.subr.bf16.mxu0 %v967
    %1515 = vmatpush1.bf16.msra.mxu0 %v966
    %1516 = vmatprep.subr.bf16.mxu0 %v971
    %1517 = vmatpush1.bf16.msra.mxu0 %v970
    %1518 = vmatprep.subr.bf16.mxu0 %v975
    %1519 = vmatpush1.bf16.msra.mxu0 %v974
    %1520 = vmatprep.subr.bf16.mxu0 %v979
    %1521 = vmatpush1.bf16.msra.mxu0 %v978
    %1522 = vmatprep.subr.bf16.mxu0 %v983
    %1523 = vmatpush1.bf16.msra.mxu0 %v982
    %1524 = vmatprep.subr.bf16.mxu0 %v987
    %1525 = vmatpush1.bf16.msra.mxu0 %v986
    %1526 = vmatprep.subr.bf16.mxu0 %v991
    %1527 = vmatpush1.bf16.msra.mxu0 %v990
    %1528 = vmatprep.mubr.bf16.mxu0 %v100
    %1529 = vmatmul.mubr.bf16.gmra.mrb[0].mxu0 %v99
    %v1530 = vpop.f32.mrb[0].mxu0
    %v1531 = vadd.f32 %v319, %v1530
    %v1532 = vpop.f32.mrb[0].mxu0
    %v1533 = vadd.f32 %v323, %v1532
    %v1534 = vpop.f32.mrb[0].mxu0
    %v1535 = vpop.f32.mrb[0].mxu0
    %1536 = vdwg.mxu0
    %1537 = vmatprep.subr.bf16.mxu0 %v995
    %1538 = vmatpush1.bf16.msra.mxu0 %v994
    %1539 = vmatprep.subr.bf16.mxu0 %v999
    %1540 = vmatpush1.bf16.msra.mxu0 %v998
    %1541 = vmatprep.subr.bf16.mxu0 %v1003
    %1542 = vmatpush1.bf16.msra.mxu0 %v1002
    %1543 = vmatprep.subr.bf16.mxu0 %v1007
    %1544 = vmatpush1.bf16.msra.mxu0 %v1006
    %1545 = vmatprep.subr.bf16.mxu0 %v1011
    %1546 = vmatpush1.bf16.msra.mxu0 %v1010
    %1547 = vmatprep.subr.bf16.mxu0 %v1015
    %1548 = vmatpush1.bf16.msra.mxu0 %v1014
    %1549 = vmatprep.subr.bf16.mxu0 %v1019
    %1550 = vmatpush1.bf16.msra.mxu0 %v1018
    %1551 = vmatprep.subr.bf16.mxu0 %v1023
    %1552 = vmatpush1.bf16.msra.mxu0 %v1022
    %1553 = vmatprep.subr.bf16.mxu0 %v1027
    %1554 = vmatpush1.bf16.msra.mxu0 %v1026
    %1555 = vmatprep.subr.bf16.mxu0 %v1031
    %1556 = vmatpush1.bf16.msra.mxu0 %v1030
    %1557 = vmatprep.subr.bf16.mxu0 %v1035
    %1558 = vmatpush1.bf16.msra.mxu0 %v1034
    %1559 = vmatprep.subr.bf16.mxu0 %v1039
    %1560 = vmatpush1.bf16.msra.mxu0 %v1038
    %1561 = vmatprep.subr.bf16.mxu0 %v1043
    %1562 = vmatpush1.bf16.msra.mxu0 %v1042
    %1563 = vmatprep.subr.bf16.mxu0 %v1047
    %1564 = vmatpush1.bf16.msra.mxu0 %v1046
    %1565 = vmatprep.subr.bf16.mxu0 %v1051
    %1566 = vmatpush1.bf16.msra.mxu0 %v1050
    %1567 = vmatprep.subr.bf16.mxu0 %v1055
    %1568 = vmatpush1.bf16.msra.mxu0 %v1054
    %1569 = vmatprep.mubr.bf16.mxu0 %v102
    %1570 = vmatmul.mubr.bf16.gmra.mrb[0].mxu0 %v101
    %v1571 = vpop.f32.mrb[0].mxu0
    %v1572 = vadd.f32 %v1531, %v1571
    %v1573 = vpop.f32.mrb[0].mxu0
    %v1574 = vadd.f32 %v1533, %v1573
    %v1575 = vpop.f32.mrb[0].mxu0
    %v1576 = vpop.f32.mrb[0].mxu0
    %1577 = vdwg.mxu0
    %1578 = vmatprep.subr.bf16.mxu0 %v1059
    %1579 = vmatpush1.bf16.msra.mxu0 %v1058
    %1580 = vmatprep.subr.bf16.mxu0 %v1063
    %1581 = vmatpush1.bf16.msra.mxu0 %v1062
    %1582 = vmatprep.subr.bf16.mxu0 %v1067
    %1583 = vmatpush1.bf16.msra.mxu0 %v1066
    %1584 = vmatprep.subr.bf16.mxu0 %v1071
    %1585 = vmatpush1.bf16.msra.mxu0 %v1070
    %1586 = vmatprep.subr.bf16.mxu0 %v1075
    %1587 = vmatpush1.bf16.msra.mxu0 %v1074
    %1588 = vmatprep.subr.bf16.mxu0 %v1079
    %1589 = vmatpush1.bf16.msra.mxu0 %v1078
    %1590 = vmatprep.subr.bf16.mxu0 %v1083
    %1591 = vmatpush1.bf16.msra.mxu0 %v1082
    %1592 = vmatprep.subr.bf16.mxu0 %v1087
    %1593 = vmatpush1.bf16.msra.mxu0 %v1086
    %1594 = vmatprep.subr.bf16.mxu0 %v1091
    %1595 = vmatpush1.bf16.msra.mxu0 %v1090
    %1596 = vmatprep.subr.bf16.mxu0 %v1095
    %1597 = vmatpush1.bf16.msra.mxu0 %v1094
    %1598 = vmatprep.subr.bf16.mxu0 %v1099
    %1599 = vmatpush1.bf16.msra.mxu0 %v1098
    %1600 = vmatprep.subr.bf16.mxu0 %v1103
    %1601 = vmatpush1.bf16.msra.mxu0 %v1102
    %1602 = vmatprep.subr.bf16.mxu0 %v1107
    %1603 = vmatpush1.bf16.msra.mxu0 %v1106
    %1604 = vmatprep.subr.bf16.mxu0 %v1111
    %1605 = vmatpush1.bf16.msra.mxu0 %v1110
    %1606 = vmatprep.subr.bf16.mxu0 %v1115
    %1607 = vmatpush1.bf16.msra.mxu0 %v1114
    %1608 = vmatprep.subr.bf16.mxu0 %v1119
    %1609 = vmatpush1.bf16.msra.mxu0 %v1118
    %1610 = vmatprep.mubr.bf16.mxu0 %v104
    %1611 = vmatmul.mubr.bf16.gmra.mrb[0].mxu0 %v103
    %v1612 = vpop.f32.mrb[0].mxu0
    %v1613 = vadd.f32 %v1572, %v1612
    %v1614 = vpop.f32.mrb[0].mxu0
    %v1615 = vadd.f32 %v1574, %v1614
    %v1616 = vpop.f32.mrb[0].mxu0
    %v1617 = vpop.f32.mrb[0].mxu0
    %1618 = vdwg.mxu0
    %1619 = vmatprep.subr.bf16.mxu0 %v1123
    %1620 = vmatpush1.bf16.msra.mxu0 %v1122
    %1621 = vmatprep.subr.bf16.mxu0 %v1127
    %1622 = vmatpush1.bf16.msra.mxu0 %v1126
    %1623 = vmatprep.subr.bf16.mxu0 0
    %1624 = vmatpush1.bf16.msra.mxu0 0
    %1625 = vmatprep.subr.bf16.mxu0 0
    %1626 = vmatpush1.bf16.msra.mxu0 0
    %1627 = vmatprep.subr.bf16.mxu0 0
    %1628 = vmatpush1.bf16.msra.mxu0 0
    %1629 = vmatprep.subr.bf16.mxu0 0
    %1630 = vmatpush1.bf16.msra.mxu0 0
    %1631 = vmatprep.subr.bf16.mxu0 0
    %1632 = vmatpush1.bf16.msra.mxu0 0
    %1633 = vmatprep.subr.bf16.mxu0 0
    %1634 = vmatpush1.bf16.msra.mxu0 0
    %1635 = vmatprep.subr.bf16.mxu0 0
    %1636 = vmatpush1.bf16.msra.mxu0 0
    %1637 = vmatprep.subr.bf16.mxu0 0
    %1638 = vmatpush1.bf16.msra.mxu0 0
    %1639 = vmatprep.subr.bf16.mxu0 0
    %1640 = vmatpush1.bf16.msra.mxu0 0
    %1641 = vmatprep.subr.bf16.mxu0 0
    %1642 = vmatpush1.bf16.msra.mxu0 0
    %1643 = vmatprep.subr.bf16.mxu0 0
    %1644 = vmatpush1.bf16.msra.mxu0 0
    %1645 = vmatprep.subr.bf16.mxu0 0
    %1646 = vmatpush1.bf16.msra.mxu0 0
    %1647 = vmatprep.subr.bf16.mxu0 0
    %1648 = vmatpush1.bf16.msra.mxu0 0
    %1649 = vmatprep.subr.bf16.mxu0 0
    %1650 = vmatpush1.bf16.msra.mxu0 0
    %1651 = vmatprep.mubr.bf16.mxu0 0
    %1652 = vmatmul.mubr.bf16.gmra.mrb[0].mxu0 %v1330
    %v1653 = vpop.f32.mrb[0].mxu0
    %v1654 = vadd.f32 %v1613, %v1653
    %v1655 = vpop.f32.mrb[0].mxu0
    %v1656 = vadd.f32 %v1615, %v1655
    %v1657 = vpop.f32.mrb[0].mxu0
    %v1658 = vpop.f32.mrb[0].mxu0
    %1659 = vdwg.mxu0
    %v1660 = vmax.f32 %v1490, 0.0
    %v1661 = vmax.f32 %v1492, 0.0
    %v1662 = vmax.f32 %v1654, 0.0
    %v1663 = vmax.f32 %v1656, 0.0
    %v1664 = vpack.c.bf16 %v1660, %v1660
    %v1665 = vpack.c.bf16 %v1661, %v1661
    %v1666 = vpack.c.bf16 %v1662, %v1662
    %v1667 = vpack.c.bf16 %v1663, %v1663
    %v1668 = vld [vmem:[#allocation4] sm:$0xff]
    %v1669 = vld [vmem:[#allocation4 + $0x8] sm:$0xff]
    %v1670 = vld [vmem:[#allocation4 + $0x10] sm:$0xff]
    %v1671 = vld [vmem:[#allocation4 + $0x18] sm:$0xff]
    %v1672 = vld [vmem:[#allocation4 + $0x20] sm:$0xff]
    %v1673 = vld [vmem:[#allocation4 + $0x28] sm:$0xff]
    %v1674 = vld [vmem:[#allocation4 + $0x30] sm:$0xff]
    %v1675 = vld [vmem:[#allocation4 + $0x38] sm:$0xff]
    %v1676 = vld [vmem:[#allocation4 + $0x40] sm:$0xff]
    %v1677 = vld [vmem:[#allocation4 + $0x48] sm:$0xff]
    %v1678 = vld [vmem:[#allocation4 + $0x50] sm:$0xff]
    %v1679 = vld [vmem:[#allocation4 + $0x58] sm:$0xff]
    %v1680 = vld [vmem:[#allocation4 + $0x60] sm:$0xff]
    %v1681 = vld [vmem:[#allocation4 + $0x68] sm:$0xff]
    %v1682 = vld [vmem:[#allocation4 + $0x70] sm:$0xff]
    %v1683 = vld [vmem:[#allocation4 + $0x78] sm:$0xff]
    %v1684 = vld [vmem:[#allocation4 + $0x80] sm:$0xff]
    %v1685 = vld [vmem:[#allocation4 + $0x88] sm:$0xff]
    %v1686 = vld [vmem:[#allocation4 + $0x90] sm:$0xff]
    %v1687 = vld [vmem:[#allocation4 + $0x98] sm:$0xff]
    %v1688 = vld [vmem:[#allocation4 + $0xa0] sm:$0xff]
    %v1689 = vld [vmem:[#allocation4 + $0xa8] sm:$0xff]
    %v1690 = vld [vmem:[#allocation4 + $0xb0] sm:$0xff]
    %v1691 = vld [vmem:[#allocation4 + $0xb8] sm:$0xff]
    %v1692 = vld [vmem:[#allocation4 + $0xc0] sm:$0xff]
    %v1693 = vld [vmem:[#allocation4 + $0xc8] sm:$0xff]
    %v1694 = vld [vmem:[#allocation4 + $0xd0] sm:$0xff]
    %v1695 = vld [vmem:[#allocation4 + $0xd8] sm:$0xff]
    %v1696 = vld [vmem:[#allocation4 + $0xe0] sm:$0xff]
    %v1697 = vld [vmem:[#allocation4 + $0xe8] sm:$0xff]
    %v1698 = vld [vmem:[#allocation4 + $0xf0] sm:$0xff]
    %v1699 = vld [vmem:[#allocation4 + $0xf8] sm:$0xff]
    %v1700 = vld [vmem:[#allocation4 + $0x100] sm:$0xff]
    %v1701 = vld [vmem:[#allocation4 + $0x108] sm:$0xff]
    %v1702 = vld [vmem:[#allocation4 + $0x110] sm:$0xff]
    %v1703 = vld [vmem:[#allocation4 + $0x118] sm:$0xff]
    %v1704 = vld [vmem:[#allocation4 + $0x120] sm:$0xff]
    %v1705 = vld [vmem:[#allocation4 + $0x128] sm:$0xff]
    %v1706 = vld [vmem:[#allocation4 + $0x130] sm:$0xff]
    %v1707 = vld [vmem:[#allocation4 + $0x138] sm:$0xff]
    %v1708 = vld [vmem:[#allocation4 + $0x140] sm:$0xff]
    %v1709 = vld [vmem:[#allocation4 + $0x148] sm:$0xff]
    %v1710 = vld [vmem:[#allocation4 + $0x150] sm:$0xff]
    %v1711 = vld [vmem:[#allocation4 + $0x158] sm:$0xff]
    %v1712 = vld [vmem:[#allocation4 + $0x160] sm:$0xff]
    %v1713 = vld [vmem:[#allocation4 + $0x168] sm:$0xff]
    %v1714 = vld [vmem:[#allocation4 + $0x170] sm:$0xff]
    %v1715 = vld [vmem:[#allocation4 + $0x178] sm:$0xff]
    %v1716 = vld [vmem:[#allocation4 + $0x180] sm:$0xff]
    %v1717 = vld [vmem:[#allocation4 + $0x188] sm:$0xff]
    %v1718 = vld [vmem:[#allocation4 + $0x190] sm:$0xff]
    %v1719 = vld [vmem:[#allocation4 + $0x198] sm:$0xff]
    %v1720 = vld [vmem:[#allocation4 + $0x1a0] sm:$0xff]
    %v1721 = vld [vmem:[#allocation4 + $0x1a8] sm:$0xff]
    %v1722 = vld [vmem:[#allocation4 + $0x1b0] sm:$0xff]
    %v1723 = vld [vmem:[#allocation4 + $0x1b8] sm:$0xff]
    %v1724 = vld [vmem:[#allocation4 + $0x1c0] sm:$0xff]
    %v1725 = vld [vmem:[#allocation4 + $0x1c8] sm:$0xff]
    %v1726 = vld [vmem:[#allocation4 + $0x1d0] sm:$0xff]
    %v1727 = vld [vmem:[#allocation4 + $0x1d8] sm:$0xff]
    %v1728 = vld [vmem:[#allocation4 + $0x1e0] sm:$0xff]
    %v1729 = vld [vmem:[#allocation4 + $0x1e8] sm:$0xff]
    %v1730 = vld [vmem:[#allocation4 + $0x1f0] sm:$0xff]
    %v1731 = vld [vmem:[#allocation4 + $0x1f8] sm:$0xff]
    %v1732 = vld [vmem:[%s4] sm:$0x3]
    %v1734 = vlaneseq
    %v1735 = vshrl.u32 %v1734, 7
    %v1736 = vsub.s32 0, %v1735
    %v1737 = vrot.slane %v1732, %v1736
    %v1738 = vlaneseq
    %v1739 = vshrl.u32 %v1738, 7
    %v1740 = vsub.s32 1, %v1739
    %v1741 = vrot.slane %v1732, %v1740
    %v1808 = vunpack.c.l.b16 %v1668
    %v1809 = vunpack.c.h.b16 %v1668
    %v1810 = vunpack.c.l.b16 %v1669
    %v1811 = vunpack.c.h.b16 %v1669
    %v1812 = vunpack.c.l.b16 %v1670
    %v1813 = vunpack.c.h.b16 %v1670
    %v1814 = vunpack.c.l.b16 %v1671
    %v1815 = vunpack.c.h.b16 %v1671
    %v1816 = vunpack.c.l.b16 %v1672
    %v1817 = vunpack.c.h.b16 %v1672
    %v1818 = vunpack.c.l.b16 %v1673
    %v1819 = vunpack.c.h.b16 %v1673
    %v1820 = vunpack.c.l.b16 %v1674
    %v1821 = vunpack.c.h.b16 %v1674
    %v1822 = vunpack.c.l.b16 %v1675
    %v1823 = vunpack.c.h.b16 %v1675
    %v1824 = vunpack.c.l.b16 %v1676
    %v1825 = vunpack.c.h.b16 %v1676
    %v1826 = vunpack.c.l.b16 %v1677
    %v1827 = vunpack.c.h.b16 %v1677
    %v1828 = vunpack.c.l.b16 %v1678
    %v1829 = vunpack.c.h.b16 %v1678
    %v1830 = vunpack.c.l.b16 %v1679
    %v1831 = vunpack.c.h.b16 %v1679
    %v1832 = vunpack.c.l.b16 %v1680
    %v1833 = vunpack.c.h.b16 %v1680
    %v1834 = vunpack.c.l.b16 %v1681
    %v1835 = vunpack.c.h.b16 %v1681
    %v1836 = vunpack.c.l.b16 %v1682
    %v1837 = vunpack.c.h.b16 %v1682
    %v1838 = vunpack.c.l.b16 %v1683
    %v1839 = vunpack.c.h.b16 %v1683
    %v1840 = vunpack.c.l.b16 %v1684
    %v1841 = vunpack.c.h.b16 %v1684
    %v1842 = vunpack.c.l.b16 %v1685
    %v1843 = vunpack.c.h.b16 %v1685
    %v1844 = vunpack.c.l.b16 %v1686
    %v1845 = vunpack.c.h.b16 %v1686
    %v1846 = vunpack.c.l.b16 %v1687
    %v1847 = vunpack.c.h.b16 %v1687
    %v1848 = vunpack.c.l.b16 %v1688
    %v1849 = vunpack.c.h.b16 %v1688
    %v1850 = vunpack.c.l.b16 %v1689
    %v1851 = vunpack.c.h.b16 %v1689
    %v1852 = vunpack.c.l.b16 %v1690
    %v1853 = vunpack.c.h.b16 %v1690
    %v1854 = vunpack.c.l.b16 %v1691
    %v1855 = vunpack.c.h.b16 %v1691
    %v1856 = vunpack.c.l.b16 %v1692
    %v1857 = vunpack.c.h.b16 %v1692
    %v1858 = vunpack.c.l.b16 %v1693
    %v1859 = vunpack.c.h.b16 %v1693
    %v1860 = vunpack.c.l.b16 %v1694
    %v1861 = vunpack.c.h.b16 %v1694
    %v1862 = vunpack.c.l.b16 %v1695
    %v1863 = vunpack.c.h.b16 %v1695
    %v1864 = vunpack.c.l.b16 %v1696
    %v1865 = vunpack.c.h.b16 %v1696
    %v1866 = vunpack.c.l.b16 %v1697
    %v1867 = vunpack.c.h.b16 %v1697
    %v1868 = vunpack.c.l.b16 %v1698
    %v1869 = vunpack.c.h.b16 %v1698
    %v1870 = vunpack.c.l.b16 %v1699
    %v1871 = vunpack.c.h.b16 %v1699
    %v1872 = vunpack.c.l.b16 %v1700
    %v1873 = vunpack.c.h.b16 %v1700
    %v1874 = vunpack.c.l.b16 %v1701
    %v1875 = vunpack.c.h.b16 %v1701
    %v1876 = vunpack.c.l.b16 %v1702
    %v1877 = vunpack.c.h.b16 %v1702
    %v1878 = vunpack.c.l.b16 %v1703
    %v1879 = vunpack.c.h.b16 %v1703
    %v1880 = vunpack.c.l.b16 %v1704
    %v1881 = vunpack.c.h.b16 %v1704
    %v1882 = vunpack.c.l.b16 %v1705
    %v1883 = vunpack.c.h.b16 %v1705
    %v1884 = vunpack.c.l.b16 %v1706
    %v1885 = vunpack.c.h.b16 %v1706
    %v1886 = vunpack.c.l.b16 %v1707
    %v1887 = vunpack.c.h.b16 %v1707
    %v1888 = vunpack.c.l.b16 %v1708
    %v1889 = vunpack.c.h.b16 %v1708
    %v1890 = vunpack.c.l.b16 %v1709
    %v1891 = vunpack.c.h.b16 %v1709
    %v1892 = vunpack.c.l.b16 %v1710
    %v1893 = vunpack.c.h.b16 %v1710
    %v1894 = vunpack.c.l.b16 %v1711
    %v1895 = vunpack.c.h.b16 %v1711
    %v1896 = vunpack.c.l.b16 %v1712
    %v1897 = vunpack.c.h.b16 %v1712
    %v1898 = vunpack.c.l.b16 %v1713
    %v1899 = vunpack.c.h.b16 %v1713
    %v1900 = vunpack.c.l.b16 %v1714
    %v1901 = vunpack.c.h.b16 %v1714
    %v1902 = vunpack.c.l.b16 %v1715
    %v1903 = vunpack.c.h.b16 %v1715
    %v1904 = vunpack.c.l.b16 %v1716
    %v1905 = vunpack.c.h.b16 %v1716
    %v1906 = vunpack.c.l.b16 %v1717
    %v1907 = vunpack.c.h.b16 %v1717
    %v1908 = vunpack.c.l.b16 %v1718
    %v1909 = vunpack.c.h.b16 %v1718
    %v1910 = vunpack.c.l.b16 %v1719
    %v1911 = vunpack.c.h.b16 %v1719
    %v1912 = vunpack.c.l.b16 %v1720
    %v1913 = vunpack.c.h.b16 %v1720
    %v1914 = vunpack.c.l.b16 %v1721
    %v1915 = vunpack.c.h.b16 %v1721
    %v1916 = vunpack.c.l.b16 %v1722
    %v1917 = vunpack.c.h.b16 %v1722
    %v1918 = vunpack.c.l.b16 %v1723
    %v1919 = vunpack.c.h.b16 %v1723
    %v1920 = vunpack.c.l.b16 %v1724
    %v1921 = vunpack.c.h.b16 %v1724
    %v1922 = vunpack.c.l.b16 %v1725
    %v1923 = vunpack.c.h.b16 %v1725
    %v1924 = vunpack.c.l.b16 %v1726
    %v1925 = vunpack.c.h.b16 %v1726
    %v1926 = vunpack.c.l.b16 %v1727
    %v1927 = vunpack.c.h.b16 %v1727
    %v1928 = vunpack.c.l.b16 %v1728
    %v1929 = vunpack.c.h.b16 %v1728
    %v1930 = vunpack.c.l.b16 %v1729
    %v1931 = vunpack.c.h.b16 %v1729
    %v1932 = vunpack.c.l.b16 %v1730
    %v1933 = vunpack.c.h.b16 %v1730
    %v1934 = vunpack.c.l.b16 %v1731
    %v1935 = vunpack.c.h.b16 %v1731
    %v1936 = vpack.c.b16 %v1810, %v1808
    %v1937 = vpack.c.b16 %v1811, %v1809
    %v1938 = vpack.c.b16 %v1814, %v1812
    %v1939 = vpack.c.b16 %v1815, %v1813
    %v1940 = vpack.c.b16 %v1818, %v1816
    %v1941 = vpack.c.b16 %v1819, %v1817
    %v1942 = vpack.c.b16 %v1822, %v1820
    %v1943 = vpack.c.b16 %v1823, %v1821
    %v1944 = vpack.c.b16 %v1826, %v1824
    %v1945 = vpack.c.b16 %v1827, %v1825
    %v1946 = vpack.c.b16 %v1830, %v1828
    %v1947 = vpack.c.b16 %v1831, %v1829
    %v1948 = vpack.c.b16 %v1834, %v1832
    %v1949 = vpack.c.b16 %v1835, %v1833
    %v1950 = vpack.c.b16 %v1838, %v1836
    %v1951 = vpack.c.b16 %v1839, %v1837
    %v1952 = vpack.c.b16 %v1842, %v1840
    %v1953 = vpack.c.b16 %v1843, %v1841
    %v1954 = vpack.c.b16 %v1846, %v1844
    %v1955 = vpack.c.b16 %v1847, %v1845
    %v1956 = vpack.c.b16 %v1850, %v1848
    %v1957 = vpack.c.b16 %v1851, %v1849
    %v1958 = vpack.c.b16 %v1854, %v1852
    %v1959 = vpack.c.b16 %v1855, %v1853
    %v1960 = vpack.c.b16 %v1858, %v1856
    %v1961 = vpack.c.b16 %v1859, %v1857
    %v1962 = vpack.c.b16 %v1862, %v1860
    %v1963 = vpack.c.b16 %v1863, %v1861
    %v1964 = vpack.c.b16 %v1866, %v1864
    %v1965 = vpack.c.b16 %v1867, %v1865
    %v1966 = vpack.c.b16 %v1870, %v1868
    %v1967 = vpack.c.b16 %v1871, %v1869
    %v1968 = vpack.c.b16 %v1874, %v1872
    %v1969 = vpack.c.b16 %v1875, %v1873
    %v1970 = vpack.c.b16 %v1878, %v1876
    %v1971 = vpack.c.b16 %v1879, %v1877
    %v1972 = vpack.c.b16 %v1882, %v1880
    %v1973 = vpack.c.b16 %v1883, %v1881
    %v1974 = vpack.c.b16 %v1886, %v1884
    %v1975 = vpack.c.b16 %v1887, %v1885
    %v1976 = vpack.c.b16 %v1890, %v1888
    %v1977 = vpack.c.b16 %v1891, %v1889
    %v1978 = vpack.c.b16 %v1894, %v1892
    %v1979 = vpack.c.b16 %v1895, %v1893
    %v1980 = vpack.c.b16 %v1898, %v1896
    %v1981 = vpack.c.b16 %v1899, %v1897
    %v1982 = vpack.c.b16 %v1902, %v1900
    %v1983 = vpack.c.b16 %v1903, %v1901
    %v1984 = vpack.c.b16 %v1906, %v1904
    %v1985 = vpack.c.b16 %v1907, %v1905
    %v1986 = vpack.c.b16 %v1910, %v1908
    %v1987 = vpack.c.b16 %v1911, %v1909
    %v1988 = vpack.c.b16 %v1914, %v1912
    %v1989 = vpack.c.b16 %v1915, %v1913
    %v1990 = vpack.c.b16 %v1918, %v1916
    %v1991 = vpack.c.b16 %v1919, %v1917
    %v1992 = vpack.c.b16 %v1922, %v1920
    %v1993 = vpack.c.b16 %v1923, %v1921
    %v1994 = vpack.c.b16 %v1926, %v1924
    %v1995 = vpack.c.b16 %v1927, %v1925
    %v1996 = vpack.c.b16 %v1930, %v1928
    %v1997 = vpack.c.b16 %v1931, %v1929
    %v1998 = vpack.c.b16 %v1934, %v1932
    %v1999 = vpack.c.b16 %v1935, %v1933
    %2064 = vmatprep.subr.bf16.mxu0 %v1937
    %2065 = vmatpush1.bf16.msra.mxu0 %v1936
    %2066 = vmatprep.subr.bf16.mxu0 %v1939
    %2067 = vmatpush1.bf16.msra.mxu0 %v1938
    %2068 = vmatprep.subr.bf16.mxu0 %v1941
    %2069 = vmatpush1.bf16.msra.mxu0 %v1940
    %2070 = vmatprep.subr.bf16.mxu0 %v1943
    %2071 = vmatpush1.bf16.msra.mxu0 %v1942
    %2072 = vmatprep.subr.bf16.mxu0 %v1945
    %2073 = vmatpush1.bf16.msra.mxu0 %v1944
    %2074 = vmatprep.subr.bf16.mxu0 %v1947
    %2075 = vmatpush1.bf16.msra.mxu0 %v1946
    %2076 = vmatprep.subr.bf16.mxu0 %v1949
    %2077 = vmatpush1.bf16.msra.mxu0 %v1948
    %2078 = vmatprep.subr.bf16.mxu0 %v1951
    %2079 = vmatpush1.bf16.msra.mxu0 %v1950
    %2080 = vmatprep.subr.bf16.mxu0 %v1953
    %2081 = vmatpush1.bf16.msra.mxu0 %v1952
    %2082 = vmatprep.subr.bf16.mxu0 %v1955
    %2083 = vmatpush1.bf16.msra.mxu0 %v1954
    %2084 = vmatprep.subr.bf16.mxu0 %v1957
    %2085 = vmatpush1.bf16.msra.mxu0 %v1956
    %2086 = vmatprep.subr.bf16.mxu0 %v1959
    %2087 = vmatpush1.bf16.msra.mxu0 %v1958
    %2088 = vmatprep.subr.bf16.mxu0 %v1961
    %2089 = vmatpush1.bf16.msra.mxu0 %v1960
    %2090 = vmatprep.subr.bf16.mxu0 %v1963
    %2091 = vmatpush1.bf16.msra.mxu0 %v1962
    %2092 = vmatprep.subr.bf16.mxu0 %v1965
    %2093 = vmatpush1.bf16.msra.mxu0 %v1964
    %2094 = vmatprep.subr.bf16.mxu0 %v1967
    %2095 = vmatpush1.bf16.msra.mxu0 %v1966
    %2096 = vmatprep.mubr.bf16.mxu0 %v1665
    %2097 = vmatmul.mubr.bf16.gmra.mrb[0].mxu0 %v1664
    %v2098 = vpop.f32.mrb[0].mxu0
    %v2099 = vadd.f32 %v1737, %v2098
    %v2100 = vpop.f32.mrb[0].mxu0
    %v2101 = vadd.f32 %v1741, %v2100
    %v2102 = vpop.f32.mrb[0].mxu0
    %v2103 = vpop.f32.mrb[0].mxu0
    %2104 = vdwg.mxu0
    %2105 = vmatprep.subr.bf16.mxu0 %v1969
    %2106 = vmatpush1.bf16.msra.mxu0 %v1968
    %2107 = vmatprep.subr.bf16.mxu0 %v1971
    %2108 = vmatpush1.bf16.msra.mxu0 %v1970
    %2109 = vmatprep.subr.bf16.mxu0 %v1973
    %2110 = vmatpush1.bf16.msra.mxu0 %v1972
    %2111 = vmatprep.subr.bf16.mxu0 %v1975
    %2112 = vmatpush1.bf16.msra.mxu0 %v1974
    %2113 = vmatprep.subr.bf16.mxu0 %v1977
    %2114 = vmatpush1.bf16.msra.mxu0 %v1976
    %2115 = vmatprep.subr.bf16.mxu0 %v1979
    %2116 = vmatpush1.bf16.msra.mxu0 %v1978
    %2117 = vmatprep.subr.bf16.mxu0 %v1981
    %2118 = vmatpush1.bf16.msra.mxu0 %v1980
    %2119 = vmatprep.subr.bf16.mxu0 %v1983
    %2120 = vmatpush1.bf16.msra.mxu0 %v1982
    %2121 = vmatprep.subr.bf16.mxu0 %v1985
    %2122 = vmatpush1.bf16.msra.mxu0 %v1984
    %2123 = vmatprep.subr.bf16.mxu0 %v1987
    %2124 = vmatpush1.bf16.msra.mxu0 %v1986
    %2125 = vmatprep.subr.bf16.mxu0 %v1989
    %2126 = vmatpush1.bf16.msra.mxu0 %v1988
    %2127 = vmatprep.subr.bf16.mxu0 %v1991
    %2128 = vmatpush1.bf16.msra.mxu0 %v1990
    %2129 = vmatprep.subr.bf16.mxu0 %v1993
    %2130 = vmatpush1.bf16.msra.mxu0 %v1992
    %2131 = vmatprep.subr.bf16.mxu0 %v1995
    %2132 = vmatpush1.bf16.msra.mxu0 %v1994
    %2133 = vmatprep.subr.bf16.mxu0 %v1997
    %2134 = vmatpush1.bf16.msra.mxu0 %v1996
    %2135 = vmatprep.subr.bf16.mxu0 %v1999
    %2136 = vmatpush1.bf16.msra.mxu0 %v1998
    %2137 = vmatprep.mubr.bf16.mxu0 %v1667
    %2138 = vmatmul.mubr.bf16.gmra.mrb[0].mxu0 %v1666
    %v2139 = vpop.f32.mrb[0].mxu0
    %v2140 = vadd.f32 %v2099, %v2139
    %v2141 = vpop.f32.mrb[0].mxu0
    %v2142 = vadd.f32 %v2101, %v2141
    %v2143 = vpop.f32.mrb[0].mxu0
    %v2144 = vpop.f32.mrb[0].mxu0
    %2145 = vdwg.mxu0
    %v2146 = vmax.f32 %v2140, 0.0
    %v2147 = vmax.f32 %v2142, 0.0
    %v2148 = vpack.c.bf16 %v2146, %v2146
    %v2149 = vpack.c.bf16 %v2147, %v2147
    %v2150 = vld [vmem:[%s5] sm:$0xf]
    %v2151 = vld [vmem:[%s5 + $0x4] sm:$0xf]
    %v2152 = vld [vmem:[%s5 + $0x8] sm:$0xf]
    %v2153 = vld [vmem:[%s5 + $0xc] sm:$0xf]
    %v2154 = vld [vmem:[%s5 + $0x10] sm:$0xf]
    %v2155 = vld [vmem:[%s5 + $0x14] sm:$0xf]
    %v2156 = vld [vmem:[%s5 + $0x18] sm:$0xf]
    %v2157 = vld [vmem:[%s5 + $0x1c] sm:$0xf]
    %v2158 = vld [vmem:[%s5 + $0x20] sm:$0xf]
    %v2159 = vld [vmem:[%s5 + $0x24] sm:$0xf]
    %v2160 = vld [vmem:[%s5 + $0x28] sm:$0xf]
    %v2161 = vld [vmem:[%s5 + $0x2c] sm:$0xf]
    %v2162 = vld [vmem:[%s5 + $0x30] sm:$0xf]
    %v2163 = vld [vmem:[%s5 + $0x34] sm:$0xf]
    %v2164 = vld [vmem:[%s5 + $0x38] sm:$0xf]
    %v2165 = vld [vmem:[%s5 + $0x3c] sm:$0xf]
    %v2166 = vld [vmem:[%s5 + $0x40] sm:$0xf]
    %v2167 = vld [vmem:[%s5 + $0x44] sm:$0xf]
    %v2168 = vld [vmem:[%s5 + $0x48] sm:$0xf]
    %v2169 = vld [vmem:[%s5 + $0x4c] sm:$0xf]
    %v2170 = vld [vmem:[%s5 + $0x50] sm:$0xf]
    %v2171 = vld [vmem:[%s5 + $0x54] sm:$0xf]
    %v2172 = vld [vmem:[%s5 + $0x58] sm:$0xf]
    %v2173 = vld [vmem:[%s5 + $0x5c] sm:$0xf]
    %v2174 = vld [vmem:[%s5 + $0x60] sm:$0xf]
    %v2175 = vld [vmem:[%s5 + $0x64] sm:$0xf]
    %v2176 = vld [vmem:[%s5 + $0x68] sm:$0xf]
    %v2177 = vld [vmem:[%s5 + $0x6c] sm:$0xf]
    %v2178 = vld [vmem:[%s5 + $0x70] sm:$0xf]
    %v2179 = vld [vmem:[%s5 + $0x74] sm:$0xf]
    %v2180 = vld [vmem:[%s5 + $0x78] sm:$0xf]
    %v2181 = vld [vmem:[%s5 + $0x7c] sm:$0xf]
    %v2182 = vld [vmem:[%s6] sm:$0x1]
    %v2184 = vlaneseq
    %v2185 = vshrl.u32 %v2184, 7
    %v2186 = vsub.s32 0, %v2185
    %v2187 = vrot.slane %v2182, %v2186
    %v2221 = vunpack.c.l.b16 %v2150
    %v2222 = vunpack.c.l.b16 %v2151
    %v2223 = vunpack.c.l.b16 %v2152
    %v2224 = vunpack.c.l.b16 %v2153
    %v2225 = vunpack.c.l.b16 %v2154
    %v2226 = vunpack.c.l.b16 %v2155
    %v2227 = vunpack.c.l.b16 %v2156
    %v2228 = vunpack.c.l.b16 %v2157
    %v2229 = vunpack.c.l.b16 %v2158
    %v2230 = vunpack.c.l.b16 %v2159
    %v2231 = vunpack.c.l.b16 %v2160
    %v2232 = vunpack.c.l.b16 %v2161
    %v2233 = vunpack.c.l.b16 %v2162
    %v2234 = vunpack.c.l.b16 %v2163
    %v2235 = vunpack.c.l.b16 %v2164
    %v2236 = vunpack.c.l.b16 %v2165
    %v2237 = vunpack.c.l.b16 %v2166
    %v2238 = vunpack.c.l.b16 %v2167
    %v2239 = vunpack.c.l.b16 %v2168
    %v2240 = vunpack.c.l.b16 %v2169
    %v2241 = vunpack.c.l.b16 %v2170
    %v2242 = vunpack.c.l.b16 %v2171
    %v2243 = vunpack.c.l.b16 %v2172
    %v2244 = vunpack.c.l.b16 %v2173
    %v2245 = vunpack.c.l.b16 %v2174
    %v2246 = vunpack.c.l.b16 %v2175
    %v2247 = vunpack.c.l.b16 %v2176
    %v2248 = vunpack.c.l.b16 %v2177
    %v2249 = vunpack.c.l.b16 %v2178
    %v2250 = vunpack.c.l.b16 %v2179
    %v2251 = vunpack.c.l.b16 %v2180
    %v2252 = vunpack.c.l.b16 %v2181
    %v2253 = vpack.c.b16 %v2222, %v2221
    %v2254 = vpack.c.b16 %v2224, %v2223
    %v2255 = vpack.c.b16 %v2226, %v2225
    %v2256 = vpack.c.b16 %v2228, %v2227
    %v2257 = vpack.c.b16 %v2230, %v2229
    %v2258 = vpack.c.b16 %v2232, %v2231
    %v2259 = vpack.c.b16 %v2234, %v2233
    %v2260 = vpack.c.b16 %v2236, %v2235
    %v2261 = vpack.c.b16 %v2238, %v2237
    %v2262 = vpack.c.b16 %v2240, %v2239
    %v2263 = vpack.c.b16 %v2242, %v2241
    %v2264 = vpack.c.b16 %v2244, %v2243
    %v2265 = vpack.c.b16 %v2246, %v2245
    %v2266 = vpack.c.b16 %v2248, %v2247
    %v2267 = vpack.c.b16 %v2250, %v2249
    %v2268 = vpack.c.b16 %v2252, %v2251
    %2285 = vmatprep.subr.bf16.mxu0 0
    %2286 = vmatpush1.bf16.msra.mxu0 %v2253
    %2287 = vmatprep.subr.bf16.mxu0 0
    %2288 = vmatpush1.bf16.msra.mxu0 %v2254
    %2289 = vmatprep.subr.bf16.mxu0 0
    %2290 = vmatpush1.bf16.msra.mxu0 %v2255
    %2291 = vmatprep.subr.bf16.mxu0 0
    %2292 = vmatpush1.bf16.msra.mxu0 %v2256
    %2293 = vmatprep.subr.bf16.mxu0 0
    %2294 = vmatpush1.bf16.msra.mxu0 %v2257
    %2295 = vmatprep.subr.bf16.mxu0 0
    %2296 = vmatpush1.bf16.msra.mxu0 %v2258
    %2297 = vmatprep.subr.bf16.mxu0 0
    %2298 = vmatpush1.bf16.msra.mxu0 %v2259
    %2299 = vmatprep.subr.bf16.mxu0 0
    %2300 = vmatpush1.bf16.msra.mxu0 %v2260
    %2301 = vmatprep.subr.bf16.mxu0 0
    %2302 = vmatpush1.bf16.msra.mxu0 %v2261
    %2303 = vmatprep.subr.bf16.mxu0 0
    %2304 = vmatpush1.bf16.msra.mxu0 %v2262
    %2305 = vmatprep.subr.bf16.mxu0 0
    %2306 = vmatpush1.bf16.msra.mxu0 %v2263
    %2307 = vmatprep.subr.bf16.mxu0 0
    %2308 = vmatpush1.bf16.msra.mxu0 %v2264
    %2309 = vmatprep.subr.bf16.mxu0 0
    %2310 = vmatpush1.bf16.msra.mxu0 %v2265
    %2311 = vmatprep.subr.bf16.mxu0 0
    %2312 = vmatpush1.bf16.msra.mxu0 %v2266
    %2313 = vmatprep.subr.bf16.mxu0 0
    %2314 = vmatpush1.bf16.msra.mxu0 %v2267
    %2315 = vmatprep.subr.bf16.mxu0 0
    %2316 = vmatpush1.bf16.msra.mxu0 %v2268
    %2317 = vmatprep.mubr.bf16.mxu0 %v2149
    %2318 = vmatmul.mubr.bf16.gmra.mrb[0].mxu0 %v2148
    %v2319 = vpop.f32.mrb[0].mxu0
    %v2320 = vadd.f32 %v2187, %v2319
    %v2321 = vpop.f32.mrb[0].mxu0
    %v2322 = vpop.f32.mrb[0].mxu0
    %v2323 = vpop.f32.mrb[0].mxu0
    %2324 = vdwg.mxu0
    %v2325 = vpack.c.bf16 %v2320, %v2320
    %2326 = vst [vmem:[%s7] sm:$0x1] %v2325
    // Predicated region
    $region38: #{dbn_forward.1} parent=1 // pred_check
      _
    $region39: #{dbn_forward.1} parent=1 // pred_check_branch
      %2328 = sbr.rel (0) target = $region41
    $region40: #{dbn_forward.1} parent=1 // pred_region
      _
    $region41: #{dbn_forward.1} parent=1 // pred_fallthru
      _
    // Predicated region
    $region42: #{dbn_forward.1} parent=1 // pred_check
      _
    $region43: #{dbn_forward.1} parent=1 // pred_check_branch
      %2330 = sbr.rel (0) target = $region45
    $region44: #{dbn_forward.1} parent=1 // pred_region
      _
    $region45: #{dbn_forward.1} parent=1 // pred_fallthru
      _
    %2331 = vsyncpa [#allocation3], 1
    %2332 = vsyncpa [#allocation5], 1

</llo_original>
